<compile_context>
chip_gen: v5e
topology: v5e:2x2
jax: 0.10.0
libtpu: 0.0.40
codegen_flags: <defaults>
</compile_context>

<pallas_src>
import functools
import math

import jax
import jax.numpy as jnp
import numpy as np
from jax.experimental import pallas as pl
from jax.experimental.pallas import tpu as pltpu

_LN_EPS = 1e-5  # torch.nn.LayerNorm default


def _round_up(x, m):
    return (x + m - 1) // m * m


def _derive_budget():
    """Pick scoped-VMEM limit and default row tile per TPU generation."""
    cap = 64 << 20  # conservative fallback (v7x per-TC physical VMEM)
    try:
        info = pltpu.get_tpu_info()
        cap = int(getattr(info, "vmem_capacity_bytes", cap))
    except Exception:
        pass
    if cap >= (100 << 20):            # v5e / v6e: 128 MiB physical
        return 96 << 20, 512
    return int(cap * 3 // 4), 256     # v7x: 64 MiB -> ~48 MiB limit, smaller rows


_VMEM_LIMIT, _DEFAULT_TM = _derive_budget()


def _row_tile(m, tm):
    # Large tiles amortize per-grid-step overhead; clip to the problem size.
    return min(tm, _round_up(m, 8))


def _divisor_tile(n, target):
    """Largest convenient tile that divides n (falls back to n itself)."""
    if n <= target:
        return n
    for t in (target, target // 2, 2 * target, 128, 64, 32, 16, 8):
        if 0 < t <= n and n % t == 0:
            return t
    return n


# ----------------------------------------------------------------------------
# Kernels
# ----------------------------------------------------------------------------
def _attn_encoder_kernel(x_ref, wqkv_ref, bqkv_ref, wo_ref, bo_ref, g_ref,
                         beta_ref, o_ref, *, heads, dhk, dhv, eps):
    """LayerNorm(x + MHA(x) @ Wo + bo) for one batch element, all heads fused.

    QKV is one lane-dense matmul against the fused/padded weight slab; per-head
    attention runs on VMEM-resident slices (no HBM traffic between stages).
    """
    x = x_ref[0]                                           # (S, D)
    xm = x.astype(wqkv_ref.dtype)
    qkv = jnp.dot(xm, wqkv_ref[...],
                  preferred_element_type=jnp.float32) + bqkv_ref[...]   # (S, Npad)

    dk = heads * dhk
    dv = heads * dhv
    ctx_heads = []
    for h in range(heads):                                 # heads stay in-block
        q = qkv[:, h * dhk:(h + 1) * dhk]                  # scale pre-folded in Wq
        k = qkv[:, dk + h * dhk: dk + (h + 1) * dhk]
        v = qkv[:, 2 * dk + h * dhv: 2 * dk + (h + 1) * dhv]
        # Contract last dims directly (no k.T materialized).
        s = jax.lax.dot_general(q, k, (((1,), (1,)), ((), ())),
                                preferred_element_type=jnp.float32)     # (S, S)
        s = s - jnp.max(s, axis=-1, keepdims=True)
        p = jnp.exp(s)
        inv = pl.reciprocal(jnp.sum(p, axis=-1, keepdims=True), approx=True)
        p = p * inv
        ctx_heads.append(jnp.dot(p, v, preferred_element_type=jnp.float32))
    ctx = ctx_heads[0] if heads == 1 else jnp.concatenate(ctx_heads, axis=-1)

    c = jnp.dot(ctx.astype(wo_ref.dtype), wo_ref[...],
                preferred_element_type=jnp.float32) + bo_ref[...]       # (S, D)
    r = x.astype(jnp.float32) + c
    mu = jnp.mean(r, axis=-1, keepdims=True)
    d = r - mu
    var = jnp.mean(d * d, axis=-1, keepdims=True)
    y = d * jax.lax.rsqrt(var + eps)
    o_ref[0] = (y * g_ref[...] + beta_ref[...]).astype(o_ref.dtype)


def _ffn_norm_kernel(x_ref, w1_ref, b1_ref, w2_ref, b2_ref, g_ref, beta_ref,
                     o_ref, acc_ref, *, eps):
    """LayerNorm(x + fc2(relu(fc1(x)))) with the hidden dim tiled over the
    'arbitrary' grid axis and accumulated in an f32 VMEM scratch."""
    k = pl.program_id(1)

    @pl.when(k == 0)
    def _():
        acc_ref[...] = jnp.zeros_like(acc_ref)

    x = x_ref[...]
    h = jnp.dot(x.astype(w1_ref.dtype), w1_ref[...],
                preferred_element_type=jnp.float32) + b1_ref[...]
    h = jnp.maximum(h, 0.0)
    acc_ref[...] += jnp.dot(h.astype(w2_ref.dtype), w2_ref[...],
                            preferred_element_type=jnp.float32)

    @pl.when(k == pl.num_programs(1) - 1)
    def _():
        r = x.astype(jnp.float32) + acc_ref[...] + b2_ref[...]
        mu = jnp.mean(r, axis=-1, keepdims=True)
        d = r - mu
        var = jnp.mean(d * d, axis=-1, keepdims=True)
        o_ref[...] = (d * jax.lax.rsqrt(var + eps) * g_ref[...]
                      + beta_ref[...]).astype(o_ref.dtype)


# ----------------------------------------------------------------------------
# pallas_call wrappers
# ----------------------------------------------------------------------------
def _attn_stage(x, wqkv_t, bqkv, wo_t, bo, g, beta, *, heads, dhk, dhv):
    B, S, D = x.shape
    n_pad = wqkv_t.shape[1]
    dv = heads * dhv
    kernel = functools.partial(_attn_encoder_kernel, heads=heads, dhk=dhk,
                               dhv=dhv, eps=_LN_EPS)
    flops = int(B * (2 * S * D * n_pad
                     + 2 * heads * S * S * (dhk + dhv)
                     + 2 * S * dv * D + 10 * S * D))
    return pl.pallas_call(
        kernel,
        out_shape=jax.ShapeDtypeStruct((B, S, D), x.dtype),
        grid=(B,),
        in_specs=[
            pl.BlockSpec((1, S, D), lambda b: (b, 0, 0)),
            pl.BlockSpec((D, n_pad), lambda b: (0, 0)),
            pl.BlockSpec((1, n_pad), lambda b: (0, 0)),
            pl.BlockSpec((dv, D), lambda b: (0, 0)),
            pl.BlockSpec((1, D), lambda b: (0, 0)),
            pl.BlockSpec((1, D), lambda b: (0, 0)),
            pl.BlockSpec((1, D), lambda b: (0, 0)),
        ],
        out_specs=pl.BlockSpec((1, S, D), lambda b: (b, 0, 0)),
        compiler_params=pltpu.CompilerParams(
            dimension_semantics=("parallel",),
            vmem_limit_bytes=_VMEM_LIMIT),
        cost_estimate=pl.CostEstimate(
            flops=flops,
            transcendentals=int(B * heads * S * S + B * S),
            bytes_accessed=int(4 * (2 * B * S * D + D * n_pad + n_pad
                                    + dv * D + 4 * D))),
    )(x, wqkv_t, bqkv, wo_t, bo, g, beta)


def _ffn_stage(x1, w1_t, b1, w2_t, b2, g, beta, *, tm, th):
    M, D = x1.shape
    H = w1_t.shape[1]
    tm = _row_tile(M, tm)
    grid = (pl.cdiv(M, tm), H // th)
    return pl.pallas_call(
        functools.partial(_ffn_norm_kernel, eps=_LN_EPS),
        out_shape=jax.ShapeDtypeStruct((M, D), x1.dtype),
        grid=grid,
        in_specs=[
            pl.BlockSpec((tm, D), lambda i, k: (i, 0)),
            pl.BlockSpec((D, th), lambda i, k: (0, k)),
            pl.BlockSpec((1, th), lambda i, k: (0, k)),
            pl.BlockSpec((th, D), lambda i, k: (k, 0)),
            pl.BlockSpec((1, D), lambda i, k: (0, 0)),
            pl.BlockSpec((1, D), lambda i, k: (0, 0)),
            pl.BlockSpec((1, D), lambda i, k: (0, 0)),
        ],
        out_specs=pl.BlockSpec((tm, D), lambda i, k: (i, 0)),
        scratch_shapes=[pltpu.VMEM((tm, D), jnp.float32)],
        compiler_params=pltpu.CompilerParams(
            dimension_semantics=("parallel", "arbitrary"),
            vmem_limit_bytes=_VMEM_LIMIT),
        cost_estimate=pl.CostEstimate(
            flops=int(4 * M * D * H + 10 * M * D),
            transcendentals=int(M),
            bytes_accessed=int(4 * (2 * M * D + 2 * D * H + H + 4 * D))),
    )(x1, w1_t, b1, w2_t, b2, g, beta)


# ----------------------------------------------------------------------------
# Encoder forward
# ----------------------------------------------------------------------------
@functools.partial(jax.jit, static_argnames=("heads", "dhk", "dhv", "tm"))
def encoder_forward(x, prep, *, heads, dhk, dhv, tm=_DEFAULT_TM):
    """Pallas Encoder forward. x: [B, S, model_dim]; prep: prepared params."""
    B, S, D = x.shape
    # Stage 1: fused QKV + multi-head attention + Wo + residual + LayerNorm.
    x1 = _attn_stage(x, prep["w_qkv_t"], prep["b_qkv"], prep["wo_t"], prep["bo"],
                     prep["ln1_g"], prep["ln1_b"], heads=heads, dhk=dhk, dhv=dhv)
    # Stage 2: fused FFN + residual + LayerNorm (hidden dim tiled).
    H = prep["w1_t"].shape[1]
    th = _divisor_tile(H, 512 if _VMEM_LIMIT >= (64 << 20) else 256)
    out = _ffn_stage(x1.reshape(B * S, D), prep["w1_t"], prep["b1"],
                     prep["w2_t"], prep["b2"], prep["ln2_g"], prep["ln2_b"],
                     tm=tm, th=th)
    return out.reshape(B, S, D)


# ----------------------------------------------------------------------------
# Parameter init (PyTorch-style layout) and one-time kernel-layout preparation
# ----------------------------------------------------------------------------
def init_encoder_params(key, model_dim, dk, dv, heads, ffn_hidden=2048,
                        dtype=jnp.float32):
    assert dk % heads == 0 and dv % heads == 0
    dhk, dhv = dk // heads, dv // heads
    ks = jax.random.split(key, 16)
    bd = 1.0 / math.sqrt(model_dim)
    bdv = 1.0 / math.sqrt(dv)
    bh = 1.0 / math.sqrt(ffn_hidden)
    u = lambda k, shape, b: jax.random.uniform(k, shape, dtype, -b, b)
    return {
        # per-head projection weights, PyTorch nn.Linear layout [out, in]
        "wq": u(ks[0], (heads, dhk, model_dim), bd), "bq": u(ks[1], (heads, dhk), bd),
        "wk": u(ks[2], (heads, dhk, model_dim), bd), "bk": u(ks[3], (heads, dhk), bd),
        "wv": u(ks[4], (heads, dhv, model_dim), bd), "bv": u(ks[5], (heads, dhv), bd),
        "wo": u(ks[6], (model_dim, dv), bdv), "bo": u(ks[7], (model_dim,), bdv),
        "w1": u(ks[8], (ffn_hidden, model_dim), bd), "b1": u(ks[9], (ffn_hidden,), bd),
        "w2": u(ks[10], (model_dim, ffn_hidden), bh), "b2": u(ks[11], (model_dim,), bh),
        "ln1_g": 1.0 + 0.1 * jax.random.normal(ks[12], (model_dim,), dtype),
        "ln1_b": 0.1 * jax.random.normal(ks[13], (model_dim,), dtype),
        "ln2_g": 1.0 + 0.1 * jax.random.normal(ks[14], (model_dim,), dtype),
        "ln2_b": 0.1 * jax.random.normal(ks[15], (model_dim,), dtype),
    }


def prepare_params(raw, *, heads, param_dtype=jnp.float32):
    """One-time weight fuse/transpose/pad into kernel layout.

    * Q|K|V weights are concatenated head-contiguously and lane-padded to 128.
    * The 1/sqrt(dhk) attention scale is folded into the Q weights/bias.
    * Matmul weights may be cast to bf16 (recommended on v6e/v7x); biases and
      LayerNorm params stay f32 (accumulation / elementwise math stays f32).
    """
    heads_, dhk, D = raw["wq"].shape
    dhv = raw["wv"].shape[1]
    dk, dv = heads * dhk, heads * dhv
    n_out = 2 * dk + dv
    n_pad = _round_up(n_out, 128)            # lane-dense QKV output slab
    scale = 1.0 / math.sqrt(dhk)
    wq = raw["wq"].astype(jnp.float32) * scale
    bq = raw["bq"].astype(jnp.float32) * scale
    w_cat = jnp.concatenate([wq.reshape(dk, D),
                             raw["wk"].astype(jnp.float32).reshape(dk, D),
                             raw["wv"].astype(jnp.float32).reshape(dv, D)], axis=0)
    b_cat = jnp.concatenate([bq.reshape(dk),
                             raw["bk"].astype(jnp.float32).reshape(dk),
                             raw["bv"].astype(jnp.float32).reshape(dv)], axis=0)
    w_qkv_t = jnp.zeros((D, n_pad), jnp.float32).at[:, :n_out].set(w_cat.T)
    b_qkv = jnp.zeros((1, n_pad), jnp.float32).at[:, :n_out].set(b_cat)
    f32 = jnp.float32
    return {
        "w_qkv_t": w_qkv_t.astype(param_dtype),       # pad cols stay exactly 0
        "b_qkv": b_qkv.astype(f32),
        "wo_t": raw["wo"].T.astype(param_dtype), "bo": raw["bo"].reshape(1, -1).astype(f32),
        "w1_t": raw["w1"].T.astype(param_dtype), "b1": raw["b1"].reshape(1, -1).astype(f32),
        "w2_t": raw["w2"].T.astype(param_dtype), "b2": raw["b2"].reshape(1, -1).astype(f32),
        "ln1_g": raw["ln1_g"].reshape(1, -1).astype(f32),
        "ln1_b": raw["ln1_b"].reshape(1, -1).astype(f32),
        "ln2_g": raw["ln2_g"].reshape(1, -1).astype(f32),
        "ln2_b": raw["ln2_b"].reshape(1, -1).astype(f32),
    }


# ----------------------------------------------------------------------------
# Pure-JAX reference (mirrors the PyTorch Encoder.forward exactly)
# ----------------------------------------------------------------------------
def encoder_ref(x, raw, *, heads):
    dhk = raw["wq"].shape[1]
    ctxs = []
    for h in range(heads):
        q = x @ raw["wq"][h].T + raw["bq"][h]
        k = x @ raw["wk"][h].T + raw["bk"][h]
        v = x @ raw["wv"][h].T + raw["bv"][h]
        s = jnp.einsum("bqd,bkd->bqk", q, k) / jnp.sqrt(jnp.float32(dhk))
        w = jax.nn.softmax(s, axis=-1)
        ctxs.append(jnp.einsum("bqk,bkd->bqd", w, v))
    c = jnp.concatenate(ctxs, axis=-1) @ raw["wo"].T + raw["bo"]

    def ln(v, g, b):
        mu = v.mean(-1, keepdims=True)
        var = ((v - mu) ** 2).mean(-1, keepdims=True)
        return (v - mu) / jnp.sqrt(var + _LN_EPS) * g + b

    x1 = ln(x + c, raw["ln1_g"], raw["ln1_b"])
    y = jnp.maximum(x1 @ raw["w1"].T + raw["b1"], 0.0) @ raw["w2"].T + raw["b2"]
    return ln(x1 + y, raw["ln2_g"], raw["ln2_b"])


if __name__ == "__main__":
    B, S, model_dim = 2, 8, 32
    dk, dv, heads = 16, 16, 2            # per-head dims 8 / 8
    key = jax.random.PRNGKey(0)
    kx, kp = jax.random.split(key)
    x = jax.random.normal(kx, (B, S, model_dim), jnp.float32)

    raw = init_encoder_params(kp, model_dim, dk, dv, heads)
    # param_dtype=jnp.bfloat16 is the recommended production setting on v6e/v7x
    # (halves HBM traffic / weight VMEM); f32 here for a tight numerical check.
    prep = prepare_params(raw, heads=heads, param_dtype=jnp.float32)

    out = encoder_forward(x, prep, heads=heads, dhk=dk // heads, dhv=dv // heads)
    jax.block_until_ready(out)

    ref = encoder_ref(x, raw, heads=heads)
    # Tolerance relaxed vs pure-f32 because the softmax denominator uses the
    # EUP approximate reciprocal (pl.reciprocal(approx=True)).
    np.testing.assert_allclose(np.asarray(out), np.asarray(ref),
                               rtol=2e-3, atol=2e-3)
    print("KERNEL_OK")
</pallas_src>

<mosaic_0001>
module attributes {stable_mosaic.version = 11 : i64} {
  func.func @_ffn_norm_kernel(%arg0: i32, %arg1: i32, %arg2: memref<16x32xf32, #tpu.memory_space<vmem>>, %arg3: memref<32x256xf32, #tpu.memory_space<vmem>>, %arg4: memref<1x256xf32, #tpu.memory_space<vmem>>, %arg5: memref<256x32xf32, #tpu.memory_space<vmem>>, %arg6: memref<1x32xf32, #tpu.memory_space<vmem>>, %arg7: memref<1x32xf32, #tpu.memory_space<vmem>>, %arg8: memref<1x32xf32, #tpu.memory_space<vmem>>, %arg9: memref<16x32xf32, #tpu.memory_space<vmem>>, %arg10: memref<16x32xf32, #tpu.memory_space<vmem>>) attributes {dimension_semantics = [#tpu.dimension_semantics<parallel>, #tpu.dimension_semantics<arbitrary>], iteration_bounds = array<i64: 1, 8>, scalar_prefetch = 0 : i64, scratch_operands = 1 : i64, tpu.core_type = #tpu.core_type<tc>, window_params = [{transform_indices = @transform_0, window_bounds = array<i64: 16, 32>}, {transform_indices = @transform_1, window_bounds = array<i64: 32, 256>}, {transform_indices = @transform_2, window_bounds = array<i64: 1, 256>}, {transform_indices = @transform_3, window_bounds = array<i64: 256, 32>}, {pipeline_mode = #tpu.pipeline_mode<synchronous>, transform_indices = @transform_4, window_bounds = array<i64: 1, 32>}, {pipeline_mode = #tpu.pipeline_mode<synchronous>, transform_indices = @transform_5, window_bounds = array<i64: 1, 32>}, {pipeline_mode = #tpu.pipeline_mode<synchronous>, transform_indices = @transform_6, window_bounds = array<i64: 1, 32>}, {transform_indices = @transform_7, window_bounds = array<i64: 16, 32>}]} {
    %c0_i32 = arith.constant 0 : i32
    %0 = arith.cmpi eq, %arg1, %c0_i32 : i32
    %1 = arith.extui %0 : i1 to i32
    %c0_i32_0 = arith.constant 0 : i32
    %2 = arith.cmpi ne, %1, %c0_i32_0 : i32
    scf.if %2 {
      %cst_15 = arith.constant 0.000000e+00 : f32
      %19 = vector.broadcast %cst_15 : f32 to vector<16x32xf32>
      %c0_16 = arith.constant 0 : index
      %c0_17 = arith.constant 0 : index
      %20 = vector.load %arg10[%c0_16, %c0_17] : memref<16x32xf32, #tpu.memory_space<vmem>>, vector<16x32xf32>
      tpu.vector_store %arg10[%c0_16, %c0_17], %19 {strides = array<i32>} : memref<16x32xf32, #tpu.memory_space<vmem>>, vector<16x32xf32>,
    } else {
    }
    %c0 = arith.constant 0 : index
    %c0_1 = arith.constant 0 : index
    %3 = vector.load %arg2[%c0, %c0_1] : memref<16x32xf32, #tpu.memory_space<vmem>>, vector<16x32xf32>
    %c0_2 = arith.constant 0 : index
    %c0_3 = arith.constant 0 : index
    %4 = vector.load %arg3[%c0_2, %c0_3] : memref<32x256xf32, #tpu.memory_space<vmem>>, vector<32x256xf32>
    %cst = arith.constant dense<0.000000e+00> : vector<16x256xf32>
    %5 = tpu.matmul %3, %4, %cst {dimension_numbers = #tpu.dot_dimension_numbers<[1], [0], [0], [1], [0, 0, 1, 1], [], []>} : vector<16x32xf32>, vector<32x256xf32>, vector<16x256xf32> -> vector<16x256xf32>
    %c0_4 = arith.constant 0 : index
    %c0_5 = arith.constant 0 : index
    %6 = vector.load %arg4[%c0_4, %c0_5] : memref<1x256xf32, #tpu.memory_space<vmem>>, vector<1x256xf32>
    %7 = vector.broadcast %6 : vector<1x256xf32> to vector<16x256xf32>
    %8 = arith.addf %5, %7 : vector<16x256xf32>
    %cst_6 = arith.constant 0.000000e+00 : f32
    %9 = vector.broadcast %cst_6 : f32 to vector<16x256xf32>
    %10 = arith.maximumf %8, %9 : vector<16x256xf32>
    %c0_7 = arith.constant 0 : index
    %c0_8 = arith.constant 0 : index
    %11 = vector.load %arg10[%c0_7, %c0_8] : memref<16x32xf32, #tpu.memory_space<vmem>>, vector<16x32xf32>
    %c0_9 = arith.constant 0 : index
    %c0_10 = arith.constant 0 : index
    %12 = vector.load %arg5[%c0_9, %c0_10] : memref<256x32xf32, #tpu.memory_space<vmem>>, vector<256x32xf32>
    %cst_11 = arith.constant dense<0.000000e+00> : vector<16x32xf32>
    %13 = tpu.matmul %10, %12, %cst_11 {dimension_numbers = #tpu.dot_dimension_numbers<[1], [0], [0], [1], [0, 0, 1, 1], [], []>} : vector<16x256xf32>, vector<256x32xf32>, vector<16x32xf32> -> vector<16x32xf32>
    %14 = arith.addf %11, %13 : vector<16x32xf32>
    %c0_12 = arith.constant 0 : index
    %c0_13 = arith.constant 0 : index
    %15 = vector.load %arg10[%c0_12, %c0_13] : memref<16x32xf32, #tpu.memory_space<vmem>>, vector<16x32xf32>
    tpu.vector_store %arg10[%c0_12, %c0_13], %14 {strides = array<i32>} : memref<16x32xf32, #tpu.memory_space<vmem>>, vector<16x32xf32>,
    %c7_i32 = arith.constant 7 : i32
    %16 = arith.cmpi eq, %arg1, %c7_i32 : i32
    %17 = arith.extui %16 : i1 to i32
    %c0_i32_14 = arith.constant 0 : i32
    %18 = arith.cmpi ne, %17, %c0_i32_14 : i32
    scf.if %18 {
      %c0_15 = arith.constant 0 : index
      %c0_16 = arith.constant 0 : index
      %19 = vector.load %arg10[%c0_15, %c0_16] : memref<16x32xf32, #tpu.memory_space<vmem>>, vector<16x32xf32>
      %20 = arith.addf %3, %19 : vector<16x32xf32>
      %c0_17 = arith.constant 0 : index
      %c0_18 = arith.constant 0 : index
      %21 = vector.load %arg6[%c0_17, %c0_18] : memref<1x32xf32, #tpu.memory_space<vmem>>, vector<1x32xf32>
      %22 = vector.broadcast %21 : vector<1x32xf32> to vector<16x32xf32>
      %23 = arith.addf %20, %22 : vector<16x32xf32>
      %cst_19 = arith.constant dense<0.000000e+00> : vector<16xf32>
      %24 = vector.multi_reduction <add>, %23, %cst_19 [1] : vector<16x32xf32> to vector<16xf32>
      %25 = vector.shape_cast %24 : vector<16xf32> to vector<16x1xf32>
      %cst_20 = arith.constant 3.200000e+01 : f32
      %26 = vector.broadcast %cst_20 : f32 to vector<16x1xf32>
      %27 = arith.divf %25, %26 : vector<16x1xf32>
      %28 = vector.broadcast %27 : vector<16x1xf32> to vector<16x32xf32>
      %29 = arith.subf %23, %28 : vector<16x32xf32>
      %30 = arith.mulf %29, %29 : vector<16x32xf32>
      %cst_21 = arith.constant dense<0.000000e+00> : vector<16xf32>
      %31 = vector.multi_reduction <add>, %30, %cst_21 [1] : vector<16x32xf32> to vector<16xf32>
      %32 = vector.shape_cast %31 : vector<16xf32> to vector<16x1xf32>
      %cst_22 = arith.constant 3.200000e+01 : f32
      %33 = vector.broadcast %cst_22 : f32 to vector<16x1xf32>
      %34 = arith.divf %32, %33 : vector<16x1xf32>
      %cst_23 = arith.constant 9.99999974E-6 : f32
      %35 = vector.broadcast %cst_23 : f32 to vector<16x1xf32>
      %36 = arith.addf %34, %35 : vector<16x1xf32>
      %37 = math.rsqrt %36 : vector<16x1xf32>
      %38 = vector.broadcast %37 : vector<16x1xf32> to vector<16x32xf32>
      %39 = arith.mulf %29, %38 : vector<16x32xf32>
      %c0_24 = arith.constant 0 : index
      %c0_25 = arith.constant 0 : index
      %40 = vector.load %arg7[%c0_24, %c0_25] : memref<1x32xf32, #tpu.memory_space<vmem>>, vector<1x32xf32>
      %41 = vector.broadcast %40 : vector<1x32xf32> to vector<16x32xf32>
      %42 = arith.mulf %39, %41 : vector<16x32xf32>
      %c0_26 = arith.constant 0 : index
      %c0_27 = arith.constant 0 : index
      %43 = vector.load %arg8[%c0_26, %c0_27] : memref<1x32xf32, #tpu.memory_space<vmem>>, vector<1x32xf32>
      %44 = vector.broadcast %43 : vector<1x32xf32> to vector<16x32xf32>
      %45 = arith.addf %42, %44 : vector<16x32xf32>
      %c0_28 = arith.constant 0 : index
      %c0_29 = arith.constant 0 : index
      %46 = vector.load %arg9[%c0_28, %c0_29] : memref<16x32xf32, #tpu.memory_space<vmem>>, vector<16x32xf32>
      tpu.vector_store %arg9[%c0_28, %c0_29], %45 {strides = array<i32>} : memref<16x32xf32, #tpu.memory_space<vmem>>, vector<16x32xf32>,
    } else {
    }
    return
  }
  func.func @transform_0(%arg0: i32, %arg1: i32) -> (i32, i32) {
    %c0_i32 = arith.constant 0 : i32
    %c0_i32_0 = arith.constant 0 : i32
    return %arg0, %c0_i32 : i32, i32
  }
  func.func @transform_1(%arg0: i32, %arg1: i32) -> (i32, i32) {
    %c0_i32 = arith.constant 0 : i32
    %c0_i32_0 = arith.constant 0 : i32
    return %c0_i32, %arg1 : i32, i32
  }
  func.func @transform_2(%arg0: i32, %arg1: i32) -> (i32, i32) {
    %c0_i32 = arith.constant 0 : i32
    %c0_i32_0 = arith.constant 0 : i32
    return %c0_i32, %arg1 : i32, i32
  }
  func.func @transform_3(%arg0: i32, %arg1: i32) -> (i32, i32) {
    %c0_i32 = arith.constant 0 : i32
    %c0_i32_0 = arith.constant 0 : i32
    return %arg1, %c0_i32 : i32, i32
  }
  func.func @transform_4(%arg0: i32, %arg1: i32) -> (i32, i32) {
    %c0_i32 = arith.constant 0 : i32
    %c0_i32_0 = arith.constant 0 : i32
    %c0_i32_1 = arith.constant 0 : i32
    return %c0_i32, %c0_i32_0 : i32, i32
  }
  func.func @transform_5(%arg0: i32, %arg1: i32) -> (i32, i32) {
    %c0_i32 = arith.constant 0 : i32
    %c0_i32_0 = arith.constant 0 : i32
    %c0_i32_1 = arith.constant 0 : i32
    return %c0_i32, %c0_i32_0 : i32, i32
  }
  func.func @transform_6(%arg0: i32, %arg1: i32) -> (i32, i32) {
    %c0_i32 = arith.constant 0 : i32
    %c0_i32_0 = arith.constant 0 : i32
    %c0_i32_1 = arith.constant 0 : i32
    return %c0_i32, %c0_i32_0 : i32, i32
  }
  func.func @transform_7(%arg0: i32, %arg1: i32) -> (i32, i32) {
    %c0_i32 = arith.constant 0 : i32
    %c0_i32_0 = arith.constant 0 : i32
    return %arg0, %c0_i32 : i32, i32
  }
}

module attributes {stable_mosaic.version = 11 : i64} {
  func.func @_attn_encoder_kernel(%arg0: i32, %arg1: memref<1x8x32xf32, #tpu.memory_space<vmem>>, %arg2: memref<32x128xf32, #tpu.memory_space<vmem>>, %arg3: memref<1x128xf32, #tpu.memory_space<vmem>>, %arg4: memref<16x32xf32, #tpu.memory_space<vmem>>, %arg5: memref<1x32xf32, #tpu.memory_space<vmem>>, %arg6: memref<1x32xf32, #tpu.memory_space<vmem>>, %arg7: memref<1x32xf32, #tpu.memory_space<vmem>>, %arg8: memref<1x8x32xf32, #tpu.memory_space<vmem>>) attributes {dimension_semantics = [#tpu.dimension_semantics<parallel>], iteration_bounds = array<i64: 2>, scalar_prefetch = 0 : i64, scratch_operands = 0 : i64, tpu.core_type = #tpu.core_type<tc>, window_params = [{transform_indices = @transform_0, window_bounds = array<i64: 1, 8, 32>}, {pipeline_mode = #tpu.pipeline_mode<synchronous>, transform_indices = @transform_1, window_bounds = array<i64: 32, 128>}, {pipeline_mode = #tpu.pipeline_mode<synchronous>, transform_indices = @transform_2, window_bounds = array<i64: 1, 128>}, {pipeline_mode = #tpu.pipeline_mode<synchronous>, transform_indices = @transform_3, window_bounds = array<i64: 16, 32>}, {pipeline_mode = #tpu.pipeline_mode<synchronous>, transform_indices = @transform_4, window_bounds = array<i64: 1, 32>}, {pipeline_mode = #tpu.pipeline_mode<synchronous>, transform_indices = @transform_5, window_bounds = array<i64: 1, 32>}, {pipeline_mode = #tpu.pipeline_mode<synchronous>, transform_indices = @transform_6, window_bounds = array<i64: 1, 32>}, {transform_indices = @transform_7, window_bounds = array<i64: 1, 8, 32>}]} {
    %c0 = arith.constant 0 : index
    %c0_0 = arith.constant 0 : index
    %c0_1 = arith.constant 0 : index
    %0 = vector.load %arg1[%c0, %c0_0, %c0_1] : memref<1x8x32xf32, #tpu.memory_space<vmem>>, vector<1x8x32xf32>
    %1 = vector.shape_cast %0 : vector<1x8x32xf32> to vector<8x32xf32>
    %c0_2 = arith.constant 0 : index
    %c0_3 = arith.constant 0 : index
    %2 = vector.load %arg2[%c0_2, %c0_3] : memref<32x128xf32, #tpu.memory_space<vmem>>, vector<32x128xf32>
    %cst = arith.constant dense<0.000000e+00> : vector<8x128xf32>
    %3 = tpu.matmul %1, %2, %cst {dimension_numbers = #tpu.dot_dimension_numbers<[1], [0], [0], [1], [0, 0, 1, 1], [], []>} : vector<8x32xf32>, vector<32x128xf32>, vector<8x128xf32> -> vector<8x128xf32>
    %c0_4 = arith.constant 0 : index
    %c0_5 = arith.constant 0 : index
    %4 = vector.load %arg3[%c0_4, %c0_5] : memref<1x128xf32, #tpu.memory_space<vmem>>, vector<1x128xf32>
    %5 = vector.broadcast %4 : vector<1x128xf32> to vector<8x128xf32>
    %6 = arith.addf %3, %5 : vector<8x128xf32>
    %7 = vector.extract_strided_slice %6 {offsets = [0, 0], sizes = [8, 8], strides = [1, 1]} : vector<8x128xf32> to vector<8x8xf32>
    %8 = vector.extract_strided_slice %6 {offsets = [0, 16], sizes = [8, 8], strides = [1, 1]} : vector<8x128xf32> to vector<8x8xf32>
    %9 = vector.extract_strided_slice %6 {offsets = [0, 32], sizes = [8, 8], strides = [1, 1]} : vector<8x128xf32> to vector<8x8xf32>
    %cst_6 = arith.constant dense<0.000000e+00> : vector<8x8xf32>
    %10 = tpu.matmul %7, %8, %cst_6 {dimension_numbers = #tpu.dot_dimension_numbers<[1], [1], [0], [0], [0, 0, 1, 0], [], []>} : vector<8x8xf32>, vector<8x8xf32>, vector<8x8xf32> -> vector<8x8xf32>
    %cst_7 = arith.constant dense<0xFF800000> : vector<8xf32>
    %11 = vector.multi_reduction <maximumf>, %10, %cst_7 [1] : vector<8x8xf32> to vector<8xf32>
    %12 = vector.shape_cast %11 : vector<8xf32> to vector<8x1xf32>
    %13 = vector.broadcast %12 : vector<8x1xf32> to vector<8x8xf32>
    %14 = arith.subf %10, %13 : vector<8x8xf32>
    %15 = math.exp %14 : vector<8x8xf32>
    %cst_8 = arith.constant dense<0.000000e+00> : vector<8xf32>
    %16 = vector.multi_reduction <add>, %15, %cst_8 [1] : vector<8x8xf32> to vector<8xf32>
    %17 = vector.shape_cast %16 : vector<8xf32> to vector<8x1xf32>
    %18 = tpu.reciprocal %17 {approx = true} : vector<8x1xf32> -> vector<8x1xf32>
    %19 = vector.broadcast %18 : vector<8x1xf32> to vector<8x8xf32>
    %20 = arith.mulf %15, %19 : vector<8x8xf32>
    %cst_9 = arith.constant dense<0.000000e+00> : vector<8x8xf32>
    %21 = tpu.matmul %20, %9, %cst_9 {dimension_numbers = #tpu.dot_dimension_numbers<[1], [0], [0], [1], [0, 0, 1, 1], [], []>} : vector<8x8xf32>, vector<8x8xf32>, vector<8x8xf32> -> vector<8x8xf32>
    %22 = vector.extract_strided_slice %6 {offsets = [0, 8], sizes = [8, 8], strides = [1, 1]} : vector<8x128xf32> to vector<8x8xf32>
    %23 = vector.extract_strided_slice %6 {offsets = [0, 24], sizes = [8, 8], strides = [1, 1]} : vector<8x128xf32> to vector<8x8xf32>
    %24 = vector.extract_strided_slice %6 {offsets = [0, 40], sizes = [8, 8], strides = [1, 1]} : vector<8x128xf32> to vector<8x8xf32>
    %cst_10 = arith.constant dense<0.000000e+00> : vector<8x8xf32>
    %25 = tpu.matmul %22, %23, %cst_10 {dimension_numbers = #tpu.dot_dimension_numbers<[1], [1], [0], [0], [0, 0, 1, 0], [], []>} : vector<8x8xf32>, vector<8x8xf32>, vector<8x8xf32> -> vector<8x8xf32>
    %cst_11 = arith.constant dense<0xFF800000> : vector<8xf32>
    %26 = vector.multi_reduction <maximumf>, %25, %cst_11 [1] : vector<8x8xf32> to vector<8xf32>
    %27 = vector.shape_cast %26 : vector<8xf32> to vector<8x1xf32>
    %28 = vector.broadcast %27 : vector<8x1xf32> to vector<8x8xf32>
    %29 = arith.subf %25, %28 : vector<8x8xf32>
    %30 = math.exp %29 : vector<8x8xf32>
    %cst_12 = arith.constant dense<0.000000e+00> : vector<8xf32>
    %31 = vector.multi_reduction <add>, %30, %cst_12 [1] : vector<8x8xf32> to vector<8xf32>
    %32 = vector.shape_cast %31 : vector<8xf32> to vector<8x1xf32>
    %33 = tpu.reciprocal %32 {approx = true} : vector<8x1xf32> -> vector<8x1xf32>
    %34 = vector.broadcast %33 : vector<8x1xf32> to vector<8x8xf32>
    %35 = arith.mulf %30, %34 : vector<8x8xf32>
    %cst_13 = arith.constant dense<0.000000e+00> : vector<8x8xf32>
    %36 = tpu.matmul %35, %24, %cst_13 {dimension_numbers = #tpu.dot_dimension_numbers<[1], [0], [0], [1], [0, 0, 1, 1], [], []>} : vector<8x8xf32>, vector<8x8xf32>, vector<8x8xf32> -> vector<8x8xf32>
    %37 = tpu.concatenate %21, %36 in 1 : vector<8x8xf32>, vector<8x8xf32> -> vector<8x16xf32>
    %c0_14 = arith.constant 0 : index
    %c0_15 = arith.constant 0 : index
    %38 = vector.load %arg4[%c0_14, %c0_15] : memref<16x32xf32, #tpu.memory_space<vmem>>, vector<16x32xf32>
    %cst_16 = arith.constant dense<0.000000e+00> : vector<8x32xf32>
    %39 = tpu.matmul %37, %38, %cst_16 {dimension_numbers = #tpu.dot_dimension_numbers<[1], [0], [0], [1], [0, 0, 1, 1], [], []>} : vector<8x16xf32>, vector<16x32xf32>, vector<8x32xf32> -> vector<8x32xf32>
    %c0_17 = arith.constant 0 : index
    %c0_18 = arith.constant 0 : index
    %40 = vector.load %arg5[%c0_17, %c0_18] : memref<1x32xf32, #tpu.memory_space<vmem>>, vector<1x32xf32>
    %41 = vector.broadcast %40 : vector<1x32xf32> to vector<8x32xf32>
    %42 = arith.addf %39, %41 : vector<8x32xf32>
    %43 = arith.addf %1, %42 : vector<8x32xf32>
    %cst_19 = arith.constant dense<0.000000e+00> : vector<8xf32>
    %44 = vector.multi_reduction <add>, %43, %cst_19 [1] : vector<8x32xf32> to vector<8xf32>
    %45 = vector.shape_cast %44 : vector<8xf32> to vector<8x1xf32>
    %cst_20 = arith.constant 3.200000e+01 : f32
    %46 = vector.broadcast %cst_20 : f32 to vector<8x1xf32>
    %47 = arith.divf %45, %46 : vector<8x1xf32>
    %48 = vector.broadcast %47 : vector<8x1xf32> to vector<8x32xf32>
    %49 = arith.subf %43, %48 : vector<8x32xf32>
    %50 = arith.mulf %49, %49 : vector<8x32xf32>
    %cst_21 = arith.constant dense<0.000000e+00> : vector<8xf32>
    %51 = vector.multi_reduction <add>, %50, %cst_21 [1] : vector<8x32xf32> to vector<8xf32>
    %52 = vector.shape_cast %51 : vector<8xf32> to vector<8x1xf32>
    %cst_22 = arith.constant 3.200000e+01 : f32
    %53 = vector.broadcast %cst_22 : f32 to vector<8x1xf32>
    %54 = arith.divf %52, %53 : vector<8x1xf32>
    %cst_23 = arith.constant 9.99999974E-6 : f32
    %55 = vector.broadcast %cst_23 : f32 to vector<8x1xf32>
    %56 = arith.addf %54, %55 : vector<8x1xf32>
    %57 = math.rsqrt %56 : vector<8x1xf32>
    %58 = vector.broadcast %57 : vector<8x1xf32> to vector<8x32xf32>
    %59 = arith.mulf %49, %58 : vector<8x32xf32>
    %c0_24 = arith.constant 0 : index
    %c0_25 = arith.constant 0 : index
    %60 = vector.load %arg6[%c0_24, %c0_25] : memref<1x32xf32, #tpu.memory_space<vmem>>, vector<1x32xf32>
    %61 = vector.broadcast %60 : vector<1x32xf32> to vector<8x32xf32>
    %62 = arith.mulf %59, %61 : vector<8x32xf32>
    %c0_26 = arith.constant 0 : index
    %c0_27 = arith.constant 0 : index
    %63 = vector.load %arg7[%c0_26, %c0_27] : memref<1x32xf32, #tpu.memory_space<vmem>>, vector<1x32xf32>
    %64 = vector.broadcast %63 : vector<1x32xf32> to vector<8x32xf32>
    %65 = arith.addf %62, %64 : vector<8x32xf32>
    %c0_28 = arith.constant 0 : index
    %c0_29 = arith.constant 0 : index
    %c0_30 = arith.constant 0 : index
    %66 = vector.load %arg8[%c0_28, %c0_29, %c0_30] : memref<1x8x32xf32, #tpu.memory_space<vmem>>, vector<1x8x32xf32>
    %67 = vector.shape_cast %66 : vector<1x8x32xf32> to vector<8x32xf32>
    %68 = vector.shape_cast %65 : vector<8x32xf32> to vector<1x8x32xf32>
    tpu.vector_store %arg8[%c0_28, %c0_29, %c0_30], %68 {strides = array<i32>} : memref<1x8x32xf32, #tpu.memory_space<vmem>>, vector<1x8x32xf32>,
    return
  }
  func.func @transform_0(%arg0: i32) -> (i32, i32, i32) {
    %c0_i32 = arith.constant 0 : i32
    %c0_i32_0 = arith.constant 0 : i32
    %c0_i32_1 = arith.constant 0 : i32
    return %arg0, %c0_i32, %c0_i32_0 : i32, i32, i32
  }
  func.func @transform_1(%arg0: i32) -> (i32, i32) {
    %c0_i32 = arith.constant 0 : i32
    %c0_i32_0 = arith.constant 0 : i32
    %c0_i32_1 = arith.constant 0 : i32
    return %c0_i32, %c0_i32_0 : i32, i32
  }
  func.func @transform_2(%arg0: i32) -> (i32, i32) {
    %c0_i32 = arith.constant 0 : i32
    %c0_i32_0 = arith.constant 0 : i32
    %c0_i32_1 = arith.constant 0 : i32
    return %c0_i32, %c0_i32_0 : i32, i32
  }
  func.func @transform_3(%arg0: i32) -> (i32, i32) {
    %c0_i32 = arith.constant 0 : i32
    %c0_i32_0 = arith.constant 0 : i32
    %c0_i32_1 = arith.constant 0 : i32
    return %c0_i32, %c0_i32_0 : i32, i32
  }
  func.func @transform_4(%arg0: i32) -> (i32, i32) {
    %c0_i32 = arith.constant 0 : i32
    %c0_i32_0 = arith.constant 0 : i32
    %c0_i32_1 = arith.constant 0 : i32
    return %c0_i32, %c0_i32_0 : i32, i32
  }
  func.func @transform_5(%arg0: i32) -> (i32, i32) {
    %c0_i32 = arith.constant 0 : i32
    %c0_i32_0 = arith.constant 0 : i32
    %c0_i32_1 = arith.constant 0 : i32
    return %c0_i32, %c0_i32_0 : i32, i32
  }
  func.func @transform_6(%arg0: i32) -> (i32, i32) {
    %c0_i32 = arith.constant 0 : i32
    %c0_i32_0 = arith.constant 0 : i32
    %c0_i32_1 = arith.constant 0 : i32
    return %c0_i32, %c0_i32_0 : i32, i32
  }
  func.func @transform_7(%arg0: i32) -> (i32, i32, i32) {
    %c0_i32 = arith.constant 0 : i32
    %c0_i32_0 = arith.constant 0 : i32
    %c0_i32_1 = arith.constant 0 : i32
    return %arg0, %c0_i32, %c0_i32_0 : i32, i32, i32
  }
}

</mosaic_0001>

<llo_original>
// kernel: encoder_forward.2
$region0: #{encoder_forward.2}
  #allocation0 [shape = 'u32[]', space=smem, size = 0x4, offset = 0x4, fixed_abs, tag = 'smem constant byte address 0x4 - core index']
  #allocation1 [shape = 'u32[72,128]{1,0:T(1,128)}', space=vmem, size = 0x9000, scoped, tag = 'internal scratch']
  %s0 = inlined_call_operand.hbm [shape: f32[2,8,32], index: 0, kind: input, shape index: {}]
  %s1 = inlined_call_operand.hbm [shape: f32[32,128], index: 1, kind: input, shape index: {}]
  %s2 = inlined_call_operand.vmem [shape: f32[1,128], index: 2, kind: input, shape index: {}]
  %s3 = inlined_call_operand.hbm [shape: f32[16,32], index: 3, kind: input, shape index: {}]
  %s4 = inlined_call_operand.vmem [shape: f32[1,32], index: 4, kind: input, shape index: {}]
  %s5 = inlined_call_operand.vmem [shape: f32[1,32], index: 5, kind: input, shape index: {}]
  %s6 = inlined_call_operand.vmem [shape: f32[1,32], index: 6, kind: input, shape index: {}]
  %s7 = inlined_call_operand.vmem [shape: f32[2,8,32], index: 7, kind: output, shape index: {}]
  %s8 = sld [smem:[#allocation0]]
  $region73: #{encoder_forward.2} parent=0
    _
  %s10 = ssub.s32 1, %s8
  %s11 = scalar_select 0, %s10, %s8
  $region1: #{encoder_forward.2} parent=0
    #allocation2 [shape = 'u8[8192]{0}', space=vmem, size = 0x2000, scoped, tag = 'input window, operand 0']
    #allocation3 [shape = 's32[2]{0}', space=sflag, size = 0x8, scoped, tag = 'scoped memory for encoder_forward.2']
    #allocation4 [shape = 'u8[16384]{0}', space=vmem, size = 0x4000, scoped, tag = 'input window, operand 1, single buffered']
    #allocation5 [shape = 's32[1]{0}', space=sflag, size = 0x4, scoped, tag = 'scoped memory for encoder_forward.2']
    #allocation6 [shape = 'u8[8192]{0}', space=vmem, size = 0x2000, scoped, tag = 'input window, operand 3, single buffered']
    %12 = vsyncpa [#allocation3], 0
    %s13 = scalar_lea.sflag [#allocation3], 1
    %14 = vsyncpa %s13, 0
    %15 = vsyncpa [#allocation5], 0
    loop: start=0, step=1, limit=4
    $region2: #{encoder_forward.2} parent=1 // loop_pre_header
      _
    $region3: #{encoder_forward.2} parent=1 // loop_header
      %s17 = sphi 0, %s21
      %p18 = scmp.ge.s32.totalorder %s17, 4
      %s27 = sphi 0, %s29
      %s30 = sphi 0, %s27
      %s31 = sphi 0, %s30
      %s47 = sphi 0, %s31
      %s51 = sphi 0, %s51
      %s53 = sphi 0, %s51
      %s54 = sphi 0, %s53
      %s68 = sphi 0, %s54
      %s72 = sphi 0, %s72
      %s74 = sphi 0, %s72
      %s75 = sphi 0, %s74
      %s89 = sphi 0, %s75
      %s93 = sphi 0, %s93
      %s95 = sphi 0, %s93
      %s96 = sphi 0, %s95
      %s110 = sphi 0, %s96
      %s114 = sphi 0, %s114
      %s116 = sphi 0, %s114
      %s117 = sphi 0, %s116
      %s131 = sphi 0, %s117
      %s135 = sphi 0, %s135
      %s137 = sphi 0, %s135
      %s138 = sphi 0, %s137
      %s152 = sphi 0, %s138
      %s156 = sphi 0, %s156
      %s158 = sphi 0, %s156
      %s159 = sphi 0, %s158
      %s173 = sphi 0, %s159
      %s179 = sphi 0, %s181
      %s182 = sphi 0, %s179
      %s183 = sphi 0, %s182
      %s199 = sphi 0, %s183
    $region4: #{encoder_forward.2} parent=1 // loop_header_branch
      %20 = sbr.rel (%p18) target = $region8
    $region5: #{encoder_forward.2} parent=1 // loop_body
      %s22 = ssub.s32 %s17, 1
      %s23 = ssub.s32 %s17, 2
      %s24 = sadd.s32 %s17, 1
      %s25 = ssub.s32 %s17, %s24
      %p26 = scmp.eq.s32.totalorder %s25, 0
      %s28 = sadd.s32 %s27, 1
      %s29 = scalar_select %p26, %s27, %s28
      %p32 = pneg %p26
      %p33 = scmp.eq.s32.totalorder %s17, 1
      %p34 = por %p32, %p33
      %p35 = scmp.ne.s32.totalorder %s27, %s30
      %p36 = scmp.eq.s32.totalorder %s17, 0
      %p37 = por %p35, %p36
      %p38 = scmp.ne.s32.totalorder %s27, %s30
      %p39 = scmp.eq.s32.totalorder %s22, 1
      %p40 = por %p38, %p39
      %p41 = scmp.ne.s32.totalorder %s30, %s31
      %p42 = scmp.eq.s32.totalorder %s22, 0
      %p43 = por %p41, %p42
      %p44 = scmp.ne.s32.totalorder %s30, %s31
      %p45 = scmp.eq.s32.totalorder %s23, 1
      %p46 = por %p44, %p45
      %p48 = scmp.ne.s32.totalorder %s31, %s47
      %p49 = scmp.eq.s32.totalorder %s23, 0
      %p50 = por %p48, %p49
      %s52 = sadd.s32 %s51, 1
      %p55 = scmp.eq.s32.totalorder %s17, 1
      %p56 = scmp.ne.s32.totalorder %s51, %s53
      %p57 = scmp.eq.s32.totalorder %s17, 0
      %p58 = por %p56, %p57
      %p59 = scmp.ne.s32.totalorder %s51, %s53
      %p60 = scmp.eq.s32.totalorder %s22, 1
      %p61 = por %p59, %p60
      %p62 = scmp.ne.s32.totalorder %s53, %s54
      %p63 = scmp.eq.s32.totalorder %s22, 0
      %p64 = por %p62, %p63
      %p65 = scmp.ne.s32.totalorder %s53, %s54
      %p66 = scmp.eq.s32.totalorder %s23, 1
      %p67 = por %p65, %p66
      %p69 = scmp.ne.s32.totalorder %s54, %s68
      %p70 = scmp.eq.s32.totalorder %s23, 0
      %p71 = por %p69, %p70
      %s73 = sadd.s32 %s72, 1
      %p76 = scmp.eq.s32.totalorder %s17, 1
      %p77 = scmp.ne.s32.totalorder %s72, %s74
      %p78 = scmp.eq.s32.totalorder %s17, 0
      %p79 = por %p77, %p78
      %p80 = scmp.ne.s32.totalorder %s72, %s74
      %p81 = scmp.eq.s32.totalorder %s22, 1
      %p82 = por %p80, %p81
      %p83 = scmp.ne.s32.totalorder %s74, %s75
      %p84 = scmp.eq.s32.totalorder %s22, 0
      %p85 = por %p83, %p84
      %p86 = scmp.ne.s32.totalorder %s74, %s75
      %p87 = scmp.eq.s32.totalorder %s23, 1
      %p88 = por %p86, %p87
      %p90 = scmp.ne.s32.totalorder %s75, %s89
      %p91 = scmp.eq.s32.totalorder %s23, 0
      %p92 = por %p90, %p91
      %s94 = sadd.s32 %s93, 1
      %p97 = scmp.eq.s32.totalorder %s17, 1
      %p98 = scmp.ne.s32.totalorder %s93, %s95
      %p99 = scmp.eq.s32.totalorder %s17, 0
      %p100 = por %p98, %p99
      %p101 = scmp.ne.s32.totalorder %s93, %s95
      %p102 = scmp.eq.s32.totalorder %s22, 1
      %p103 = por %p101, %p102
      %p104 = scmp.ne.s32.totalorder %s95, %s96
      %p105 = scmp.eq.s32.totalorder %s22, 0
      %p106 = por %p104, %p105
      %p107 = scmp.ne.s32.totalorder %s95, %s96
      %p108 = scmp.eq.s32.totalorder %s23, 1
      %p109 = por %p107, %p108
      %p111 = scmp.ne.s32.totalorder %s96, %s110
      %p112 = scmp.eq.s32.totalorder %s23, 0
      %p113 = por %p111, %p112
      %s115 = sadd.s32 %s114, 1
      %p118 = scmp.eq.s32.totalorder %s17, 1
      %p119 = scmp.ne.s32.totalorder %s114, %s116
      %p120 = scmp.eq.s32.totalorder %s17, 0
      %p121 = por %p119, %p120
      %p122 = scmp.ne.s32.totalorder %s114, %s116
      %p123 = scmp.eq.s32.totalorder %s22, 1
      %p124 = por %p122, %p123
      %p125 = scmp.ne.s32.totalorder %s116, %s117
      %p126 = scmp.eq.s32.totalorder %s22, 0
      %p127 = por %p125, %p126
      %p128 = scmp.ne.s32.totalorder %s116, %s117
      %p129 = scmp.eq.s32.totalorder %s23, 1
      %p130 = por %p128, %p129
      %p132 = scmp.ne.s32.totalorder %s117, %s131
      %p133 = scmp.eq.s32.totalorder %s23, 0
      %p134 = por %p132, %p133
      %s136 = sadd.s32 %s135, 1
      %p139 = scmp.eq.s32.totalorder %s17, 1
      %p140 = scmp.ne.s32.totalorder %s135, %s137
      %p141 = scmp.eq.s32.totalorder %s17, 0
      %p142 = por %p140, %p141
      %p143 = scmp.ne.s32.totalorder %s135, %s137
      %p144 = scmp.eq.s32.totalorder %s22, 1
      %p145 = por %p143, %p144
      %p146 = scmp.ne.s32.totalorder %s137, %s138
      %p147 = scmp.eq.s32.totalorder %s22, 0
      %p148 = por %p146, %p147
      %p149 = scmp.ne.s32.totalorder %s137, %s138
      %p150 = scmp.eq.s32.totalorder %s23, 1
      %p151 = por %p149, %p150
      %p153 = scmp.ne.s32.totalorder %s138, %s152
      %p154 = scmp.eq.s32.totalorder %s23, 0
      %p155 = por %p153, %p154
      %s157 = sadd.s32 %s156, 1
      %p160 = scmp.eq.s32.totalorder %s17, 1
      %p161 = scmp.ne.s32.totalorder %s156, %s158
      %p162 = scmp.eq.s32.totalorder %s17, 0
      %p163 = por %p161, %p162
      %p164 = scmp.ne.s32.totalorder %s156, %s158
      %p165 = scmp.eq.s32.totalorder %s22, 1
      %p166 = por %p164, %p165
      %p167 = scmp.ne.s32.totalorder %s158, %s159
      %p168 = scmp.eq.s32.totalorder %s22, 0
      %p169 = por %p167, %p168
      %p170 = scmp.ne.s32.totalorder %s158, %s159
      %p171 = scmp.eq.s32.totalorder %s23, 1
      %p172 = por %p170, %p171
      %p174 = scmp.ne.s32.totalorder %s159, %s173
      %p175 = scmp.eq.s32.totalorder %s23, 0
      %p176 = por %p174, %p175
      %s177 = ssub.s32 %s17, %s24
      %p178 = scmp.eq.s32.totalorder %s177, 0
      %s180 = sadd.s32 %s179, 1
      %s181 = scalar_select %p178, %s179, %s180
      %p184 = pneg %p178
      %p185 = scmp.eq.s32.totalorder %s17, 1
      %p186 = por %p184, %p185
      %p187 = scmp.ne.s32.totalorder %s179, %s182
      %p188 = scmp.eq.s32.totalorder %s17, 0
      %p189 = por %p187, %p188
      %p190 = scmp.ne.s32.totalorder %s179, %s182
      %p191 = scmp.eq.s32.totalorder %s22, 1
      %p192 = por %p190, %p191
      %p193 = scmp.ne.s32.totalorder %s182, %s183
      %p194 = scmp.eq.s32.totalorder %s22, 0
      %p195 = por %p193, %p194
      %p196 = scmp.ne.s32.totalorder %s182, %s183
      %p197 = scmp.eq.s32.totalorder %s23, 1
      %p198 = por %p196, %p197
      %p200 = scmp.ne.s32.totalorder %s183, %s199
      %p201 = scmp.eq.s32.totalorder %s23, 0
      %p202 = por %p200, %p201
      %p203 = scmp.le.s32.totalorder 1, %s17
      %p204 = scmp.lt.s32.totalorder %s17, 3
      %p205 = pnand %p203, %p204
      %p206 = pneg %p205
      // Predicated region
      $region9: #{encoder_forward.2} parent=5 // pred_check
        _
      $region10: #{encoder_forward.2} parent=5 // pred_check_branch
        %208 = sbr.rel (%p205) target = $region12
      $region11: #{encoder_forward.2} parent=5 // pred_region
        %s209 = ssub.s32 %s17, 1
        // Predicated region
        $region13: #{encoder_forward.2} parent=11 // pred_check
          %p210 = pneg %p64
        $region14: #{encoder_forward.2} parent=11 // pred_check_branch
          %212 = sbr.rel (%p210) target = $region16
        $region15: #{encoder_forward.2} parent=11 // pred_region
          %214 = vsyncadd [#allocation5], 0
          %s215 = sshll.u32 %s1, 4
          %s216 = int_to_ptr.hbm [resolvable:$true] %s215
          %s217 = sshll.u32 [#allocation4], 4
          %s218 = int_to_ptr.vmem [resolvable:$true] %s217
          %223 = dma.hbm_to_vmem [thread:$0]  %s216, 512, %s218, [#allocation5], 128, 128, 8
        $region16: #{encoder_forward.2} parent=11 // pred_fallthru
          _
        // Predicated region
        $region17: #{encoder_forward.2} parent=11 // pred_check
          %p224 = pneg %p85
        $region18: #{encoder_forward.2} parent=11 // pred_check_branch
          %226 = sbr.rel (%p224) target = $region20
        $region19: #{encoder_forward.2} parent=11 // pred_region
          _
        $region20: #{encoder_forward.2} parent=11 // pred_fallthru
          _
        // Predicated region
        $region21: #{encoder_forward.2} parent=11 // pred_check
          %p227 = pneg %p106
        $region22: #{encoder_forward.2} parent=11 // pred_check_branch
          %229 = sbr.rel (%p227) target = $region24
        $region23: #{encoder_forward.2} parent=11 // pred_region
          %231 = vsyncadd [#allocation5], 0
          %s232 = sshll.u32 %s3, 4
          %s233 = int_to_ptr.hbm [resolvable:$true] %s232
          %s234 = sshll.u32 [#allocation6], 4
          %s235 = int_to_ptr.vmem [resolvable:$true] %s234
          %240 = dma.hbm_to_vmem [thread:$0]  %s233, 256, %s235, [#allocation5], 128, 128, 8
        $region24: #{encoder_forward.2} parent=11 // pred_fallthru
          _
        // Predicated region
        $region25: #{encoder_forward.2} parent=11 // pred_check
          %p241 = pneg %p127
        $region26: #{encoder_forward.2} parent=11 // pred_check_branch
          %243 = sbr.rel (%p241) target = $region28
        $region27: #{encoder_forward.2} parent=11 // pred_region
          _
        $region28: #{encoder_forward.2} parent=11 // pred_fallthru
          _
        // Predicated region
        $region29: #{encoder_forward.2} parent=11 // pred_check
          %p244 = pneg %p148
        $region30: #{encoder_forward.2} parent=11 // pred_check_branch
          %246 = sbr.rel (%p244) target = $region32
        $region31: #{encoder_forward.2} parent=11 // pred_region
          _
        $region32: #{encoder_forward.2} parent=11 // pred_fallthru
          _
        // Predicated region
        $region33: #{encoder_forward.2} parent=11 // pred_check
          %p247 = pneg %p169
        $region34: #{encoder_forward.2} parent=11 // pred_check_branch
          %249 = sbr.rel (%p247) target = $region36
        $region35: #{encoder_forward.2} parent=11 // pred_region
          _
        $region36: #{encoder_forward.2} parent=11 // pred_fallthru
          _
      $region12: #{encoder_forward.2} parent=5 // pred_fallthru
        _
      %p250 = scmp.lt.s32.totalorder %s17, 2
      // Predicated region
      $region37: #{encoder_forward.2} parent=5 // pred_check
        %p251 = pneg %p250
      $region38: #{encoder_forward.2} parent=5 // pred_check_branch
        %253 = sbr.rel (%p251) target = $region40
      $region39: #{encoder_forward.2} parent=5 // pred_region
        // Predicated region
        $region41: #{encoder_forward.2} parent=39 // pred_check
          %p254 = pneg %p37
        $region42: #{encoder_forward.2} parent=39 // pred_check_branch
          %256 = sbr.rel (%p254) target = $region44
        $region43: #{encoder_forward.2} parent=39 // pred_region
          %s257 = sand.u32 %s27, 1
          %s258 = scalar_lea.sflag [#allocation3], %s257
          %s259 = sand.u32 %s27, 1
          %s260 = smul.addr %s259, 8
          %s261 = scalar_lea.vmem [#allocation2], %s260
          %263 = vsyncadd %s258, 0
          %s264 = smul.addr %s17, 8
          %s265 = scalar_lea.hbm %s0, %s264
          %s267 = sshll.u32 %s265, 4
          %s268 = int_to_ptr.hbm [resolvable:$true] %s267
          %s269 = sshll.u32 %s261, 4
          %s270 = int_to_ptr.vmem [resolvable:$true] %s269
          %272 = dma.hbm_to_vmem [thread:$0]  %s268, 128, %s270, %s258
        $region44: #{encoder_forward.2} parent=39 // pred_fallthru
          _
      $region40: #{encoder_forward.2} parent=5 // pred_fallthru
        _
      %p273 = scmp.le.s32.totalorder 1, %s17
      %p274 = scmp.lt.s32.totalorder %s17, 3
      %p275 = pnand %p273, %p274
      %p276 = pneg %p275
      // Predicated region
      $region45: #{encoder_forward.2} parent=5 // pred_check
        _
      $region46: #{encoder_forward.2} parent=5 // pred_check_branch
        %278 = sbr.rel (%p275) target = $region48
      $region47: #{encoder_forward.2} parent=5 // pred_region
        %s279 = ssub.s32 %s17, 1
        %s280 = sand.u32 %s30, 1
        %s281 = scalar_lea.sflag [#allocation3], %s280
        %s282 = sand.u32 %s30, 1
        %s283 = smul.addr %s282, 8
        %s284 = scalar_lea.vmem [#allocation2], %s283
        // Predicated region
        $region49: #{encoder_forward.2} parent=47 // pred_check
          %p285 = pneg %p43
        $region50: #{encoder_forward.2} parent=47 // pred_check_branch
          %287 = sbr.rel (%p285) target = $region52
        $region51: #{encoder_forward.2} parent=47 // pred_region
          %289 = dma.done %s281, 128
        $region52: #{encoder_forward.2} parent=47 // pred_fallthru
          _
        // Predicated region
        $region53: #{encoder_forward.2} parent=47 // pred_check
          %p290 = pneg %p64
        $region54: #{encoder_forward.2} parent=47 // pred_check_branch
          %292 = sbr.rel (%p290) target = $region56
        $region55: #{encoder_forward.2} parent=47 // pred_region
          %294 = dma.done [#allocation5], 512
        $region56: #{encoder_forward.2} parent=47 // pred_fallthru
          _
        // Predicated region
        $region57: #{encoder_forward.2} parent=47 // pred_check
          %p295 = pneg %p106
        $region58: #{encoder_forward.2} parent=47 // pred_check_branch
          %297 = sbr.rel (%p295) target = $region60
        $region59: #{encoder_forward.2} parent=47 // pred_region
          %299 = dma.done [#allocation5], 256
        $region60: #{encoder_forward.2} parent=47 // pred_fallthru
          _
        %s300 = sand.u32 %s30, 1
        %s301 = scalar_lea.sflag [#allocation3], %s300
        %s302 = sand.u32 %s30, 1
        %s303 = smul.addr %s302, 8
        %s304 = scalar_lea.vmem [#allocation2], %s303
        %p305 = pneg %p43
        %p306 = pneg %p40
        %p307 = pneg %p64
        %p308 = pneg %p61
        %p309 = pneg %p85
        %p310 = pneg %p82
        %p311 = pneg %p106
        %p312 = pneg %p103
        %p313 = pneg %p127
        %p314 = pneg %p124
        %p315 = pneg %p148
        %p316 = pneg %p145
        %p317 = pneg %p169
        %p318 = pneg %p166
        %p319 = pneg %p195
        %p320 = pneg %p192
        %p321 = scmp.lt.s32.totalorder %s22, 1
        %s322 = scalar_select %p321, %s22, 1
        %s323 = smul.addr %s322, 8
        %s324 = scalar_lea.vmem %s7, %s323
        %p325 = scmp.lt.s32.totalorder %s22, 1
        %s326 = scalar_select %p325, %s22, 1
        %s327 = smul.addr %s326, 8
        %s328 = scalar_lea.vmem %s7, %s327
        %v329 = vld [vmem:[%s284] sm:$0xff]
        %v330 = vld [vmem:[#allocation4] sm:$0xff]
        %v331 = vld [vmem:[#allocation4 + $0x8] sm:$0xff]
        %v332 = vld [vmem:[#allocation4 + $0x10] sm:$0xff]
        %v333 = vld [vmem:[#allocation4 + $0x18] sm:$0xff]
        %v334 = vld [vmem:[%s2] sm:$0x1]
        %v336 = vperm.slane %v334, 0
        %vm338 = vcmask 261120
        %v340 = vsel %vm338, %v329, 0
        %342 = vmatpush.msra.mxu0 0.0
        %343 = vmatpush.msra.mxu0 0.0
        %344 = vmatpush.msra.mxu0 0.0
        %345 = vmatpush.msra.mxu0 0.0
        %346 = vmatpush.msra.mxu0 0.0
        %347 = vmatpush.msra.mxu0 0.0
        %348 = vmatpush.msra.mxu0 0.0
        %349 = vmatpush.msra.mxu0 0.0
        %350 = vmatpush.msra.mxu0 0.0
        %351 = vmatpush.msra.mxu0 0.0
        %352 = vmatpush.msra.mxu0 0.0
        %353 = vmatpush.msra.mxu0 0.0
        %354 = vmatpush.msra.mxu0 %v333
        %355 = vmatpush.msra.mxu0 %v332
        %356 = vmatpush.msra.mxu0 %v331
        %357 = vmatpush.msra.mxu0 %v330
        %358 = vmatmul.f32.gmra.mxu0 %v340
        %v359 = vpop.f32.mrf.mxu0
        %v360 = vadd.f32 %v336, %v359
        %361 = vdwg.mxu0
        %363 = vrot.lane.b32.xlu0 %v360, 112
        %v364 = vpop.permute.xlu0 %363
        %vm365 = vcmask 64512
        %v366 = vsel %vm365, %v360, 0
        %v368 = vsel %vm365, %v364, 0
        %370 = vmatpush.xpose.msra.mxu0 0.0
        %371 = vmatpush.xpose.msra.mxu0 0.0
        %372 = vmatpush.xpose.msra.mxu0 0.0
        %373 = vmatpush.xpose.msra.mxu0 0.0
        %374 = vmatpush.xpose.msra.mxu0 0.0
        %375 = vmatpush.xpose.msra.mxu0 0.0
        %376 = vmatpush.xpose.msra.mxu0 0.0
        %377 = vmatpush.xpose.msra.mxu0 0.0
        %378 = vmatpush.xpose.msra.mxu0 0.0
        %379 = vmatpush.xpose.msra.mxu0 0.0
        %380 = vmatpush.xpose.msra.mxu0 0.0
        %381 = vmatpush.xpose.msra.mxu0 0.0
        %382 = vmatpush.xpose.msra.mxu0 0.0
        %383 = vmatpush.xpose.msra.mxu0 0.0
        %384 = vmatpush.xpose.msra.mxu0 0.0
        %385 = vmatpush.xpose.msra.mxu0 %v368
        %386 = vmatmul.f32.gmra.mxu0 %v366
        %v387 = vpop.f32.mrf.mxu0
        %v388 = vadd.f32 0.0, %v387
        %389 = vdwg.mxu0
        %v390 = vsel %vm365, %v388, -inf
        %391 = vmax.xlane.f32.xlu0 %v390
        %v392 = vpop.xlane.xlu0 %391
        %v393 = vsub.f32 %v388, %v392
        %v394 = vmul.f32 %v393, 1.442695
        %v395 = vpow.pop %v394
        %v396 = vsel %vm365, %v395, 0.0
        %397 = vadd.xlane.f32.xlu0 %v396
        %v398 = vpop.xlane.xlu0 %397
        %v399 = vrcp.pop %v398
        %v400 = vmul.f32 %v395, %v399
        %401 = vrot.lane.b32.xlu0 %v360, 96
        %v402 = vpop.permute.xlu0 %401
        %v405 = vsel %vm365, %v400, 0
        %407 = vmatpush.msra.mxu0 0.0
        %408 = vmatpush.msra.mxu0 0.0
        %409 = vmatpush.msra.mxu0 0.0
        %410 = vmatpush.msra.mxu0 0.0
        %411 = vmatpush.msra.mxu0 0.0
        %412 = vmatpush.msra.mxu0 0.0
        %413 = vmatpush.msra.mxu0 0.0
        %414 = vmatpush.msra.mxu0 0.0
        %415 = vmatpush.msra.mxu0 0.0
        %416 = vmatpush.msra.mxu0 0.0
        %417 = vmatpush.msra.mxu0 0.0
        %418 = vmatpush.msra.mxu0 0.0
        %419 = vmatpush.msra.mxu0 0.0
        %420 = vmatpush.msra.mxu0 0.0
        %421 = vmatpush.msra.mxu0 0.0
        %422 = vmatpush.msra.mxu0 %v402
        %423 = vmatmul.f32.gmra.mxu0 %v405
        %v424 = vpop.f32.mrf.mxu0
        %v425 = vadd.f32 0.0, %v424
        %426 = vdwg.mxu0
        %427 = vrot.lane.b32.xlu0 %v360, 120
        %v428 = vpop.permute.xlu0 %427
        %429 = vrot.lane.b32.xlu0 %v360, 104
        %v430 = vpop.permute.xlu0 %429
        %v431 = vsel %vm365, %v428, 0
        %v433 = vsel %vm365, %v430, 0
        %435 = vmatpush.xpose.msra.mxu0 0.0
        %436 = vmatpush.xpose.msra.mxu0 0.0
        %437 = vmatpush.xpose.msra.mxu0 0.0
        %438 = vmatpush.xpose.msra.mxu0 0.0
        %439 = vmatpush.xpose.msra.mxu0 0.0
        %440 = vmatpush.xpose.msra.mxu0 0.0
        %441 = vmatpush.xpose.msra.mxu0 0.0
        %442 = vmatpush.xpose.msra.mxu0 0.0
        %443 = vmatpush.xpose.msra.mxu0 0.0
        %444 = vmatpush.xpose.msra.mxu0 0.0
        %445 = vmatpush.xpose.msra.mxu0 0.0
        %446 = vmatpush.xpose.msra.mxu0 0.0
        %447 = vmatpush.xpose.msra.mxu0 0.0
        %448 = vmatpush.xpose.msra.mxu0 0.0
        %449 = vmatpush.xpose.msra.mxu0 0.0
        %450 = vmatpush.xpose.msra.mxu0 %v433
        %451 = vmatmul.f32.gmra.mxu0 %v431
        %v452 = vpop.f32.mrf.mxu0
        %v453 = vadd.f32 0.0, %v452
        %454 = vdwg.mxu0
        %v455 = vsel %vm365, %v453, -inf
        %456 = vmax.xlane.f32.xlu0 %v455
        %v457 = vpop.xlane.xlu0 %456
        %v458 = vsub.f32 %v453, %v457
        %v459 = vmul.f32 %v458, 1.442695
        %v460 = vpow.pop %v459
        %v461 = vsel %vm365, %v460, 0.0
        %462 = vadd.xlane.f32.xlu0 %v461
        %v463 = vpop.xlane.xlu0 %462
        %v464 = vrcp.pop %v463
        %v465 = vmul.f32 %v460, %v464
        %466 = vrot.lane.b32.xlu0 %v360, 88
        %v467 = vpop.permute.xlu0 %466
        %v470 = vsel %vm365, %v465, 0
        %472 = vmatpush.msra.mxu0 0.0
        %473 = vmatpush.msra.mxu0 0.0
        %474 = vmatpush.msra.mxu0 0.0
        %475 = vmatpush.msra.mxu0 0.0
        %476 = vmatpush.msra.mxu0 0.0
        %477 = vmatpush.msra.mxu0 0.0
        %478 = vmatpush.msra.mxu0 0.0
        %479 = vmatpush.msra.mxu0 0.0
        %480 = vmatpush.msra.mxu0 0.0
        %481 = vmatpush.msra.mxu0 0.0
        %482 = vmatpush.msra.mxu0 0.0
        %483 = vmatpush.msra.mxu0 0.0
        %484 = vmatpush.msra.mxu0 0.0
        %485 = vmatpush.msra.mxu0 0.0
        %486 = vmatpush.msra.mxu0 0.0
        %487 = vmatpush.msra.mxu0 %v467
        %488 = vmatmul.f32.gmra.mxu0 %v470
        %v489 = vpop.f32.mrf.mxu0
        %v490 = vadd.f32 0.0, %v489
        %491 = vdwg.mxu0
        %493 = vrot.lane.b32.xlu0 %v490, 8
        %v494 = vpop.permute.xlu0 %493
        %v496 = vsel %vm365, %v425, %v494
        %v497 = vld [vmem:[#allocation6] sm:$0xff]
        %v498 = vld [vmem:[#allocation6 + $0x8] sm:$0xff]
        %v499 = vld [vmem:[%s4] sm:$0x1]
        %v501 = vperm.slane %v499, 0
        %vm503 = vcmask 130048
        %v505 = vsel %vm503, %v496, 0
        %507 = vmatpush.msra.mxu0 0.0
        %508 = vmatpush.msra.mxu0 0.0
        %509 = vmatpush.msra.mxu0 0.0
        %510 = vmatpush.msra.mxu0 0.0
        %511 = vmatpush.msra.mxu0 0.0
        %512 = vmatpush.msra.mxu0 0.0
        %513 = vmatpush.msra.mxu0 0.0
        %514 = vmatpush.msra.mxu0 0.0
        %515 = vmatpush.msra.mxu0 0.0
        %516 = vmatpush.msra.mxu0 0.0
        %517 = vmatpush.msra.mxu0 0.0
        %518 = vmatpush.msra.mxu0 0.0
        %519 = vmatpush.msra.mxu0 0.0
        %520 = vmatpush.msra.mxu0 0.0
        %521 = vmatpush.msra.mxu0 %v498
        %522 = vmatpush.msra.mxu0 %v497
        %523 = vmatmul.f32.gmra.mxu0 %v505
        %v524 = vpop.f32.mrf.mxu0
        %v525 = vadd.f32 %v501, %v524
        %526 = vdwg.mxu0
        %v527 = vadd.f32 %v329, %v525
        %v528 = vsel %vm338, %v527, 0.0
        %529 = vadd.xlane.f32.xlu0 %v528
        %v530 = vpop.xlane.xlu0 %529
        %v531 = vrcp.pop 32.0
        %v532 = vmul.f32 32.0, %v531
        %v533 = vsub.f32 1.0, %v532
        %v534 = vmul.f32 %v531, %v533
        %v535 = vadd.f32 %v531, %v534
        %vm536 = vweird.f32 %v531
        %v537 = vsel %vm536, %v531, %v535
        %v538 = vmul.f32 %v530, %v537
        %v539 = vsub.f32 %v527, %v538
        %v540 = vmul.f32 %v539, %v539
        %v541 = vsel %vm338, %v540, 0.0
        %542 = vadd.xlane.f32.xlu0 %v541
        %v543 = vpop.xlane.xlu0 %542
        %v544 = vmul.f32 %v543, %v537
        %v545 = vadd.f32 %v544, 1e-05
        %v546 = vrsqrt.pop %v545
        %v547 = vmul.f32 %v546, %v545
        %v548 = vmul.f32 %v547, %v546
        %v549 = vmul.f32 0.5, %v548
        %v550 = vsub.f32 1.5, %v549
        %v551 = vmul.f32 %v546, %v550
        %vm552 = vweird.f32 %v545
        %vm553 = vweird.f32 %v546
        %vm554 = vmor %vm552, %vm553
        %v555 = vsel %vm554, %v546, %v551
        %v556 = vmul.f32 %v539, %v555
        %v557 = vld [vmem:[%s5] sm:$0x1]
        %v559 = vperm.slane %v557, 0
        %v561 = vmul.f32 %v556, %v559
        %v562 = vld [vmem:[%s6] sm:$0x1]
        %v564 = vperm.slane %v562, 0
        %v566 = vadd.f32 %v561, %v564
        %567 = vst.msk [vmem:[%s328] sm:$0xff] %vm338, %v566
        %p568 = scmp.lt.s32.totalorder %s22, 1
        %s569 = scalar_select %p568, %s22, 1
        %s570 = smul.addr %s569, 8
        %s571 = scalar_lea.vmem %s7, %s570
        // Predicated region
        $region61: #{encoder_forward.2} parent=47 // pred_check
          %p572 = pneg %p192
        $region62: #{encoder_forward.2} parent=47 // pred_check_branch
          %574 = sbr.rel (%p572) target = $region64
        $region63: #{encoder_forward.2} parent=47 // pred_region
          _
        $region64: #{encoder_forward.2} parent=47 // pred_fallthru
          _
      $region48: #{encoder_forward.2} parent=5 // pred_fallthru
        _
      %p575 = scmp.le.s32.totalorder 2, %s17
      // Predicated region
      $region65: #{encoder_forward.2} parent=5 // pred_check
        %p576 = pneg %p575
      $region66: #{encoder_forward.2} parent=5 // pred_check_branch
        %578 = sbr.rel (%p576) target = $region68
      $region67: #{encoder_forward.2} parent=5 // pred_region
        %s579 = ssub.s32 %s17, 2
        // Predicated region
        $region69: #{encoder_forward.2} parent=67 // pred_check
          %p580 = pneg %p198
        $region70: #{encoder_forward.2} parent=67 // pred_check_branch
          %582 = sbr.rel (%p580) target = $region72
        $region71: #{encoder_forward.2} parent=67 // pred_region
          %p583 = scmp.lt.s32.totalorder %s23, 1
          %s584 = scalar_select %p583, %s23, 1
          %s585 = smul.addr %s584, 8
          %s586 = scalar_lea.vmem %s7, %s585
        $region72: #{encoder_forward.2} parent=67 // pred_fallthru
          _
      $region68: #{encoder_forward.2} parent=5 // pred_fallthru
        _
    $region6: #{encoder_forward.2} parent=1 // loop_footer
      %s21 = sadd.s32 1, %s17
    $region7: #{encoder_forward.2} parent=1 // loop_footer_branch
      %16 = sbr.rel target = $region3
    $region8: #{encoder_forward.2} parent=1 // loop_exit
      _
    %587 = vsyncpa [#allocation3], 1
    %s588 = scalar_lea.sflag [#allocation3], 1
    %589 = vsyncpa %s588, 1
    %590 = vsyncpa [#allocation5], 1

// kernel: encoder_forward.3
$region0: #{encoder_forward.3}
  #allocation0 [shape = 'u32[]', space=smem, size = 0x4, offset = 0x4, fixed_abs, tag = 'smem constant byte address 0x4 - core index']
  #allocation1 [shape = 'u32[72,128]{1,0:T(1,128)}', space=vmem, size = 0x9000, scoped, tag = 'internal scratch']
  #allocation2 [shape = 'f32[16,32]{1,0:T(8,128)}', space=vmem, size = 0x2000, scoped, tag = 'scratch operand']
  %s0 = inlined_call_operand.vmem [shape: f32[16,32], index: 0, kind: input, shape index: {}]
  %s1 = inlined_call_operand.vmem [shape: f32[32,2048], index: 1, kind: input, shape index: {}]
  %s2 = inlined_call_operand.vmem [shape: f32[1,2048], index: 2, kind: input, shape index: {}]
  %s3 = inlined_call_operand.vmem [shape: f32[2048,32], index: 3, kind: input, shape index: {}]
  %s4 = inlined_call_operand.vmem [shape: f32[1,32], index: 4, kind: input, shape index: {}]
  %s5 = inlined_call_operand.vmem [shape: f32[1,32], index: 5, kind: input, shape index: {}]
  %s6 = inlined_call_operand.vmem [shape: f32[1,32], index: 6, kind: input, shape index: {}]
  %s7 = inlined_call_operand.hbm [shape: f32[16,32], index: 7, kind: output, shape index: {}]
  %s8 = sld [smem:[#allocation0]]
  $region92: #{encoder_forward.3} parent=0
    _
  %s10 = ssub.s32 1, %s8
  %s11 = scalar_select 0, %s10, %s8
  $region1: #{encoder_forward.3} parent=0
    #allocation3 [shape = 'u8[65536]{0}', space=vmem, size = 0x10000, scoped, tag = 'input window, operand 1']
    #allocation4 [shape = 'u8[8192]{0}', space=vmem, size = 0x2000, scoped, tag = 'output window, operand 0, single buffered']
    #allocation5 [shape = 's32[2]{0}', space=sflag, size = 0x8, scoped, tag = 'scoped memory for encoder_forward.3']
    %12 = vsyncpa [#allocation5], 0
    loop: start=0, step=1, limit=10
    $region2: #{encoder_forward.3} parent=1 // loop_pre_header
      _
    $region3: #{encoder_forward.3} parent=1 // loop_header
      %s14 = sphi 0, %s18
      %p15 = scmp.ge.s32.totalorder %s14, 10
      %s21 = sphi 0, %s33
      %s22 = sphi 0, %s29
      %s23 = sphi 0, %s21
      %s24 = sphi 0, %s22
      %s25 = sphi 0, %s23
      %s26 = sphi 0, %s24
      %s36 = sphi 0, %s38
      %s39 = sphi 0, %s36
      %s40 = sphi 0, %s39
      %s56 = sphi 0, %s40
      %s62 = sphi 0, %s64
      %s65 = sphi 0, %s62
      %s66 = sphi 0, %s65
      %s82 = sphi 0, %s66
      %s88 = sphi 0, %s90
      %s91 = sphi 0, %s88
      %s92 = sphi 0, %s91
      %s108 = sphi 0, %s92
      %s114 = sphi 0, %s116
      %s117 = sphi 0, %s114
      %s118 = sphi 0, %s117
      %s134 = sphi 0, %s118
      %s138 = sphi 0, %s138
      %s140 = sphi 0, %s138
      %s141 = sphi 0, %s140
      %s155 = sphi 0, %s141
      %s159 = sphi 0, %s159
      %s161 = sphi 0, %s159
      %s162 = sphi 0, %s161
      %s176 = sphi 0, %s162
      %s180 = sphi 0, %s180
      %s182 = sphi 0, %s180
      %s183 = sphi 0, %s182
      %s197 = sphi 0, %s183
      %s203 = sphi 0, %s205
      %s206 = sphi 0, %s203
      %s207 = sphi 0, %s206
      %s223 = sphi 0, %s207
    $region4: #{encoder_forward.3} parent=1 // loop_header_branch
      %17 = sbr.rel (%p15) target = $region8
    $region5: #{encoder_forward.3} parent=1 // loop_body
      %s19 = ssub.s32 %s14, 1
      %s20 = ssub.s32 %s14, 2
      %s27 = sadd.s32 1, %s22
      %p28 = scmp.ge.s32.totalorder %s27, 8
      %s29 = scalar_select %p28, 0, %s27
      %s30 = sadd.s32 1, %s21
      %s31 = scalar_select %p28, %s30, %s21
      %p32 = scmp.ge.s32.totalorder %s31, 1
      %s33 = scalar_select %p32, 0, %s31
      %s34 = ssub.s32 %s21, %s33
      %p35 = scmp.eq.s32.totalorder %s34, 0
      %s37 = sadd.s32 %s36, 1
      %s38 = scalar_select %p35, %s36, %s37
      %p41 = pneg %p35
      %p42 = scmp.eq.s32.totalorder %s14, 7
      %p43 = por %p41, %p42
      %p44 = scmp.ne.s32.totalorder %s36, %s39
      %p45 = scmp.eq.s32.totalorder %s14, 0
      %p46 = por %p44, %p45
      %p47 = scmp.ne.s32.totalorder %s36, %s39
      %p48 = scmp.eq.s32.totalorder %s19, 7
      %p49 = por %p47, %p48
      %p50 = scmp.ne.s32.totalorder %s39, %s40
      %p51 = scmp.eq.s32.totalorder %s19, 0
      %p52 = por %p50, %p51
      %p53 = scmp.ne.s32.totalorder %s39, %s40
      %p54 = scmp.eq.s32.totalorder %s20, 7
      %p55 = por %p53, %p54
      %p57 = scmp.ne.s32.totalorder %s40, %s56
      %p58 = scmp.eq.s32.totalorder %s20, 0
      %p59 = por %p57, %p58
      %s60 = ssub.s32 %s22, %s29
      %p61 = scmp.eq.s32.totalorder %s60, 0
      %s63 = sadd.s32 %s62, 1
      %s64 = scalar_select %p61, %s62, %s63
      %p67 = pneg %p61
      %p68 = scmp.eq.s32.totalorder %s14, 7
      %p69 = por %p67, %p68
      %p70 = scmp.ne.s32.totalorder %s62, %s65
      %p71 = scmp.eq.s32.totalorder %s14, 0
      %p72 = por %p70, %p71
      %p73 = scmp.ne.s32.totalorder %s62, %s65
      %p74 = scmp.eq.s32.totalorder %s19, 7
      %p75 = por %p73, %p74
      %p76 = scmp.ne.s32.totalorder %s65, %s66
      %p77 = scmp.eq.s32.totalorder %s19, 0
      %p78 = por %p76, %p77
      %p79 = scmp.ne.s32.totalorder %s65, %s66
      %p80 = scmp.eq.s32.totalorder %s20, 7
      %p81 = por %p79, %p80
      %p83 = scmp.ne.s32.totalorder %s66, %s82
      %p84 = scmp.eq.s32.totalorder %s20, 0
      %p85 = por %p83, %p84
      %s86 = ssub.s32 %s22, %s29
      %p87 = scmp.eq.s32.totalorder %s86, 0
      %s89 = sadd.s32 %s88, 1
      %s90 = scalar_select %p87, %s88, %s89
      %p93 = pneg %p87
      %p94 = scmp.eq.s32.totalorder %s14, 7
      %p95 = por %p93, %p94
      %p96 = scmp.ne.s32.totalorder %s88, %s91
      %p97 = scmp.eq.s32.totalorder %s14, 0
      %p98 = por %p96, %p97
      %p99 = scmp.ne.s32.totalorder %s88, %s91
      %p100 = scmp.eq.s32.totalorder %s19, 7
      %p101 = por %p99, %p100
      %p102 = scmp.ne.s32.totalorder %s91, %s92
      %p103 = scmp.eq.s32.totalorder %s19, 0
      %p104 = por %p102, %p103
      %p105 = scmp.ne.s32.totalorder %s91, %s92
      %p106 = scmp.eq.s32.totalorder %s20, 7
      %p107 = por %p105, %p106
      %p109 = scmp.ne.s32.totalorder %s92, %s108
      %p110 = scmp.eq.s32.totalorder %s20, 0
      %p111 = por %p109, %p110
      %s112 = ssub.s32 %s22, %s29
      %p113 = scmp.eq.s32.totalorder %s112, 0
      %s115 = sadd.s32 %s114, 1
      %s116 = scalar_select %p113, %s114, %s115
      %p119 = pneg %p113
      %p120 = scmp.eq.s32.totalorder %s14, 7
      %p121 = por %p119, %p120
      %p122 = scmp.ne.s32.totalorder %s114, %s117
      %p123 = scmp.eq.s32.totalorder %s14, 0
      %p124 = por %p122, %p123
      %p125 = scmp.ne.s32.totalorder %s114, %s117
      %p126 = scmp.eq.s32.totalorder %s19, 7
      %p127 = por %p125, %p126
      %p128 = scmp.ne.s32.totalorder %s117, %s118
      %p129 = scmp.eq.s32.totalorder %s19, 0
      %p130 = por %p128, %p129
      %p131 = scmp.ne.s32.totalorder %s117, %s118
      %p132 = scmp.eq.s32.totalorder %s20, 7
      %p133 = por %p131, %p132
      %p135 = scmp.ne.s32.totalorder %s118, %s134
      %p136 = scmp.eq.s32.totalorder %s20, 0
      %p137 = por %p135, %p136
      %s139 = sadd.s32 %s138, 1
      %p142 = scmp.eq.s32.totalorder %s14, 7
      %p143 = scmp.ne.s32.totalorder %s138, %s140
      %p144 = scmp.eq.s32.totalorder %s14, 0
      %p145 = por %p143, %p144
      %p146 = scmp.ne.s32.totalorder %s138, %s140
      %p147 = scmp.eq.s32.totalorder %s19, 7
      %p148 = por %p146, %p147
      %p149 = scmp.ne.s32.totalorder %s140, %s141
      %p150 = scmp.eq.s32.totalorder %s19, 0
      %p151 = por %p149, %p150
      %p152 = scmp.ne.s32.totalorder %s140, %s141
      %p153 = scmp.eq.s32.totalorder %s20, 7
      %p154 = por %p152, %p153
      %p156 = scmp.ne.s32.totalorder %s141, %s155
      %p157 = scmp.eq.s32.totalorder %s20, 0
      %p158 = por %p156, %p157
      %s160 = sadd.s32 %s159, 1
      %p163 = scmp.eq.s32.totalorder %s14, 7
      %p164 = scmp.ne.s32.totalorder %s159, %s161
      %p165 = scmp.eq.s32.totalorder %s14, 0
      %p166 = por %p164, %p165
      %p167 = scmp.ne.s32.totalorder %s159, %s161
      %p168 = scmp.eq.s32.totalorder %s19, 7
      %p169 = por %p167, %p168
      %p170 = scmp.ne.s32.totalorder %s161, %s162
      %p171 = scmp.eq.s32.totalorder %s19, 0
      %p172 = por %p170, %p171
      %p173 = scmp.ne.s32.totalorder %s161, %s162
      %p174 = scmp.eq.s32.totalorder %s20, 7
      %p175 = por %p173, %p174
      %p177 = scmp.ne.s32.totalorder %s162, %s176
      %p178 = scmp.eq.s32.totalorder %s20, 0
      %p179 = por %p177, %p178
      %s181 = sadd.s32 %s180, 1
      %p184 = scmp.eq.s32.totalorder %s14, 7
      %p185 = scmp.ne.s32.totalorder %s180, %s182
      %p186 = scmp.eq.s32.totalorder %s14, 0
      %p187 = por %p185, %p186
      %p188 = scmp.ne.s32.totalorder %s180, %s182
      %p189 = scmp.eq.s32.totalorder %s19, 7
      %p190 = por %p188, %p189
      %p191 = scmp.ne.s32.totalorder %s182, %s183
      %p192 = scmp.eq.s32.totalorder %s19, 0
      %p193 = por %p191, %p192
      %p194 = scmp.ne.s32.totalorder %s182, %s183
      %p195 = scmp.eq.s32.totalorder %s20, 7
      %p196 = por %p194, %p195
      %p198 = scmp.ne.s32.totalorder %s183, %s197
      %p199 = scmp.eq.s32.totalorder %s20, 0
      %p200 = por %p198, %p199
      %s201 = ssub.s32 %s21, %s33
      %p202 = scmp.eq.s32.totalorder %s201, 0
      %s204 = sadd.s32 %s203, 1
      %s205 = scalar_select %p202, %s203, %s204
      %p208 = pneg %p202
      %p209 = scmp.eq.s32.totalorder %s14, 7
      %p210 = por %p208, %p209
      %p211 = scmp.ne.s32.totalorder %s203, %s206
      %p212 = scmp.eq.s32.totalorder %s14, 0
      %p213 = por %p211, %p212
      %p214 = scmp.ne.s32.totalorder %s203, %s206
      %p215 = scmp.eq.s32.totalorder %s19, 7
      %p216 = por %p214, %p215
      %p217 = scmp.ne.s32.totalorder %s206, %s207
      %p218 = scmp.eq.s32.totalorder %s19, 0
      %p219 = por %p217, %p218
      %p220 = scmp.ne.s32.totalorder %s206, %s207
      %p221 = scmp.eq.s32.totalorder %s20, 7
      %p222 = por %p220, %p221
      %p224 = scmp.ne.s32.totalorder %s207, %s223
      %p225 = scmp.eq.s32.totalorder %s20, 0
      %p226 = por %p224, %p225
      %p227 = scmp.le.s32.totalorder 1, %s14
      %p228 = scmp.lt.s32.totalorder %s14, 9
      %p229 = pnand %p227, %p228
      %p230 = pneg %p229
      // Predicated region
      $region9: #{encoder_forward.3} parent=5 // pred_check
        _
      $region10: #{encoder_forward.3} parent=5 // pred_check_branch
        %232 = sbr.rel (%p229) target = $region12
      $region11: #{encoder_forward.3} parent=5 // pred_region
        %s233 = ssub.s32 %s14, 1
        // Predicated region
        $region13: #{encoder_forward.3} parent=11 // pred_check
          %p234 = pneg %p52
        $region14: #{encoder_forward.3} parent=11 // pred_check_branch
          %236 = sbr.rel (%p234) target = $region16
        $region15: #{encoder_forward.3} parent=11 // pred_region
          %s237 = smul.u32 2, %s23
          %p238 = scmp.lt.s32.totalorder %s237, 1
          %s239 = scalar_select %p238, %s237, 1
          %s240 = smul.addr %s239, 8
          %s241 = scalar_lea.vmem %s0, %s240
          %s242 = smul.u32 2, %s23
        $region16: #{encoder_forward.3} parent=11 // pred_fallthru
          _
        // Predicated region
        $region17: #{encoder_forward.3} parent=11 // pred_check
          %p243 = pneg %p151
        $region18: #{encoder_forward.3} parent=11 // pred_check_branch
          %245 = sbr.rel (%p243) target = $region20
        $region19: #{encoder_forward.3} parent=11 // pred_region
          _
        $region20: #{encoder_forward.3} parent=11 // pred_fallthru
          _
        // Predicated region
        $region21: #{encoder_forward.3} parent=11 // pred_check
          %p246 = pneg %p172
        $region22: #{encoder_forward.3} parent=11 // pred_check_branch
          %248 = sbr.rel (%p246) target = $region24
        $region23: #{encoder_forward.3} parent=11 // pred_region
          _
        $region24: #{encoder_forward.3} parent=11 // pred_fallthru
          _
        // Predicated region
        $region25: #{encoder_forward.3} parent=11 // pred_check
          %p249 = pneg %p193
        $region26: #{encoder_forward.3} parent=11 // pred_check_branch
          %251 = sbr.rel (%p249) target = $region28
        $region27: #{encoder_forward.3} parent=11 // pred_region
          _
        $region28: #{encoder_forward.3} parent=11 // pred_fallthru
          _
      $region12: #{encoder_forward.3} parent=5 // pred_fallthru
        _
      %p252 = scmp.lt.s32.totalorder %s14, 8
      // Predicated region
      $region29: #{encoder_forward.3} parent=5 // pred_check
        %p253 = pneg %p252
      $region30: #{encoder_forward.3} parent=5 // pred_check_branch
        %255 = sbr.rel (%p253) target = $region32
      $region31: #{encoder_forward.3} parent=5 // pred_region
        // Predicated region
        $region33: #{encoder_forward.3} parent=31 // pred_check
          %p256 = pneg %p72
        $region34: #{encoder_forward.3} parent=31 // pred_check_branch
          %258 = sbr.rel (%p256) target = $region36
        $region35: #{encoder_forward.3} parent=31 // pred_region
          %s259 = sand.u32 %s62, 1
          %s260 = sand.u32 %s62, 1
          %s261 = smul.addr %s260, 64
          %s262 = scalar_lea.vmem [#allocation3], %s261
          %s263 = smul.u32 2, %s22
          %s264 = smul.addr %s263, 8
          %s265 = scalar_lea.vmem %s1, %s264
          // Predicated region
          $region37: #{encoder_forward.3} parent=35 // pred_check
            _
          $region38: #{encoder_forward.3} parent=35 // pred_check_branch
            %267 = sbr.rel (0) target = $region40
          $region39: #{encoder_forward.3} parent=35 // pred_region
            // Predicated region
            $region41: #{encoder_forward.3} parent=39 // pred_check
              _
            $region42: #{encoder_forward.3} parent=39 // pred_check_branch
              %269 = sbr.rel (0) target = $region44
            $region43: #{encoder_forward.3} parent=39 // pred_region
              loop: start=0, step=1, limit=1
              $region45: #{encoder_forward.3} parent=43 // loop_pre_header
                _
              $region46: #{encoder_forward.3} parent=43 // loop_header
                %s271 = sphi 0, %s275
                %p272 = scmp.ge.s32.totalorder %s271, 1
                %s276 = sphi %s265, %s265
                %s277 = sphi %s262, %s262
              $region47: #{encoder_forward.3} parent=43 // loop_header_branch
                %274 = sbr.rel (%p272) target = $region51
              $region48: #{encoder_forward.3} parent=43 // loop_body
                %v278 = vld [vmem:[%s276] sm:$0xff]
                %279 = vst [vmem:[%s277] sm:$0xff] %v278
                %v280 = vld [vmem:[%s276 + $0x8] sm:$0xff]
                %281 = vst [vmem:[%s277 + $0x8] sm:$0xff] %v280
                %v282 = vld [vmem:[%s276 + $0x80] sm:$0xff]
                %283 = vst [vmem:[%s277 + $0x10] sm:$0xff] %v282
                %v284 = vld [vmem:[%s276 + $0x88] sm:$0xff]
                %285 = vst [vmem:[%s277 + $0x18] sm:$0xff] %v284
                %v286 = vld [vmem:[%s276 + $0x100] sm:$0xff]
                %287 = vst [vmem:[%s277 + $0x20] sm:$0xff] %v286
                %v288 = vld [vmem:[%s276 + $0x108] sm:$0xff]
                %289 = vst [vmem:[%s277 + $0x28] sm:$0xff] %v288
                %v290 = vld [vmem:[%s276 + $0x180] sm:$0xff]
                %291 = vst [vmem:[%s277 + $0x30] sm:$0xff] %v290
                %v292 = vld [vmem:[%s276 + $0x188] sm:$0xff]
                %293 = vst [vmem:[%s277 + $0x38] sm:$0xff] %v292
              $region49: #{encoder_forward.3} parent=43 // loop_footer
                %s275 = sadd.s32 1, %s271
              $region50: #{encoder_forward.3} parent=43 // loop_footer_branch
                %270 = sbr.rel target = $region46
              $region51: #{encoder_forward.3} parent=43 // loop_exit
                _
            $region44: #{encoder_forward.3} parent=39 // pred_fallthru
              _
            // Predicated region
            $region52: #{encoder_forward.3} parent=39 // pred_check
              _
            $region53: #{encoder_forward.3} parent=39 // pred_check_branch
              %295 = sbr.rel target = $region55
            $region54: #{encoder_forward.3} parent=39 // pred_region
              _
            $region55: #{encoder_forward.3} parent=39 // pred_fallthru
              _
          $region40: #{encoder_forward.3} parent=35 // pred_fallthru
            _
          %296 = vnop
        $region36: #{encoder_forward.3} parent=31 // pred_fallthru
          _
        // Predicated region
        $region56: #{encoder_forward.3} parent=31 // pred_check
          %p297 = pneg %p98
        $region57: #{encoder_forward.3} parent=31 // pred_check_branch
          %299 = sbr.rel (%p297) target = $region59
        $region58: #{encoder_forward.3} parent=31 // pred_region
          %s300 = smul.u32 2, %s22
          %p301 = scmp.lt.s32.totalorder %s300, 15
          %s302 = scalar_select %p301, %s300, 15
          %s303 = scalar_lea.vmem %s2, %s302
          %s304 = smul.u32 2, %s22
        $region59: #{encoder_forward.3} parent=31 // pred_fallthru
          _
        // Predicated region
        $region60: #{encoder_forward.3} parent=31 // pred_check
          %p305 = pneg %p124
        $region61: #{encoder_forward.3} parent=31 // pred_check_branch
          %307 = sbr.rel (%p305) target = $region63
        $region62: #{encoder_forward.3} parent=31 // pred_region
          %s308 = smul.u32 32, %s22
          %p309 = scmp.lt.s32.totalorder %s308, 255
          %s310 = scalar_select %p309, %s308, 255
          %s311 = smul.addr %s310, 8
          %s312 = scalar_lea.vmem %s3, %s311
          %s313 = smul.u32 32, %s22
        $region63: #{encoder_forward.3} parent=31 // pred_fallthru
          _
      $region32: #{encoder_forward.3} parent=5 // pred_fallthru
        _
      %p314 = scmp.le.s32.totalorder 1, %s14
      %p315 = scmp.lt.s32.totalorder %s14, 9
      %p316 = pnand %p314, %p315
      %p317 = pneg %p316
      // Predicated region
      $region64: #{encoder_forward.3} parent=5 // pred_check
        _
      $region65: #{encoder_forward.3} parent=5 // pred_check_branch
        %319 = sbr.rel (%p316) target = $region67
      $region66: #{encoder_forward.3} parent=5 // pred_region
        %s320 = ssub.s32 %s14, 1
        %s321 = sand.u32 %s65, 1
        %s322 = sand.u32 %s65, 1
        %s323 = smul.addr %s322, 64
        %s324 = scalar_lea.vmem [#allocation3], %s323
        // Predicated region
        $region68: #{encoder_forward.3} parent=66 // pred_check
          %p325 = pneg %p78
        $region69: #{encoder_forward.3} parent=66 // pred_check_branch
          %327 = sbr.rel (%p325) target = $region71
        $region70: #{encoder_forward.3} parent=66 // pred_region
          _
        $region71: #{encoder_forward.3} parent=66 // pred_fallthru
          _
        %s328 = smul.u32 2, %s23
        %p329 = scmp.lt.s32.totalorder %s328, 1
        %s330 = scalar_select %p329, %s328, 1
        %s331 = smul.addr %s330, 8
        %s332 = scalar_lea.vmem %s0, %s331
        %p333 = pneg %p52
        %p334 = pneg %p49
        %s335 = sand.u32 %s65, 1
        %s336 = sand.u32 %s65, 1
        %s337 = smul.addr %s336, 64
        %s338 = scalar_lea.vmem [#allocation3], %s337
        %p339 = pneg %p78
        %p340 = pneg %p75
        %s341 = smul.u32 2, %s24
        %p342 = scmp.lt.s32.totalorder %s341, 15
        %s343 = scalar_select %p342, %s341, 15
        %s344 = scalar_lea.vmem %s2, %s343
        %p345 = pneg %p104
        %p346 = pneg %p101
        %s347 = smul.u32 32, %s24
        %p348 = scmp.lt.s32.totalorder %s347, 255
        %s349 = scalar_select %p348, %s347, 255
        %s350 = smul.addr %s349, 8
        %s351 = scalar_lea.vmem %s3, %s350
        %p352 = pneg %p130
        %p353 = pneg %p127
        %p354 = pneg %p151
        %p355 = pneg %p148
        %p356 = pneg %p172
        %p357 = pneg %p169
        %p358 = pneg %p193
        %p359 = pneg %p190
        %p360 = pneg %p219
        %p361 = pneg %p216
        %s362 = smul.u32 2, %s23
        %p363 = scmp.lt.s32.totalorder %s362, 1
        %s364 = scalar_select %p363, %s362, 1
        %s365 = smul.addr %s364, 8
        %s366 = scalar_lea.vmem %s0, %s365
        %s367 = smul.u32 2, %s23
        %s368 = smul.u32 2, %s24
        %s369 = smul.u32 2, %s24
        %p370 = scmp.lt.s32.totalorder %s369, 15
        %s371 = scalar_select %p370, %s369, 15
        %s372 = scalar_lea.vmem %s2, %s371
        %s373 = smul.u32 2, %s24
        %s374 = smul.u32 32, %s24
        %p375 = scmp.lt.s32.totalorder %s374, 255
        %s376 = scalar_select %p375, %s374, 255
        %s377 = smul.addr %s376, 8
        %s378 = scalar_lea.vmem %s3, %s377
        %s379 = smul.u32 32, %s24
        %s380 = smul.u32 2, %s23
        %p381 = scmp.eq.s32.totalorder %s24, 0
        // Predicated region
        $region72: #{encoder_forward.3} parent=66 // pred_check
          %p382 = pneg %p381
        $region73: #{encoder_forward.3} parent=66 // pred_check_branch
          %384 = sbr.rel (%p382) target = $region75
        $region74: #{encoder_forward.3} parent=66 // pred_region
          %vm385 = vcmask 261120
          %386 = vst.msk [vmem:[#allocation2] sm:$0xff] %vm385, 0.0
          %387 = vst.msk [vmem:[#allocation2 + $0x8] sm:$0xff] %vm385, 0.0
        $region75: #{encoder_forward.3} parent=66 // pred_fallthru
          _
        %v388 = vld [vmem:[%s366] sm:$0xff]
        %v389 = vld [vmem:[%s366 + $0x8] sm:$0xff]
        %v390 = vld [vmem:[%s324] sm:$0xff]
        %v391 = vld [vmem:[%s324 + $0x8] sm:$0xff]
        %v392 = vld [vmem:[%s324 + $0x10] sm:$0xff]
        %v393 = vld [vmem:[%s324 + $0x18] sm:$0xff]
        %v394 = vld [vmem:[%s324 + $0x20] sm:$0xff]
        %v395 = vld [vmem:[%s324 + $0x28] sm:$0xff]
        %v396 = vld [vmem:[%s324 + $0x30] sm:$0xff]
        %v397 = vld [vmem:[%s324 + $0x38] sm:$0xff]
        %v398 = vld [vmem:[%s372] sm:$0x3]
        %v400 = vperm.slane %v398, 0
        %v401 = vperm.slane %v398, 1
        %vm404 = vcmask 261120
        %v406 = vsel %vm404, %v388, 0
        %v409 = vsel %vm404, %v389, 0
        %411 = vmatpush.msra.mxu0 0.0
        %412 = vmatpush.msra.mxu0 0.0
        %413 = vmatpush.msra.mxu0 0.0
        %414 = vmatpush.msra.mxu0 0.0
        %415 = vmatpush.msra.mxu0 0.0
        %416 = vmatpush.msra.mxu0 0.0
        %417 = vmatpush.msra.mxu0 0.0
        %418 = vmatpush.msra.mxu0 0.0
        %419 = vmatpush.msra.mxu0 0.0
        %420 = vmatpush.msra.mxu0 0.0
        %421 = vmatpush.msra.mxu0 0.0
        %422 = vmatpush.msra.mxu0 0.0
        %423 = vmatpush.msra.mxu0 %v396
        %424 = vmatpush.msra.mxu0 %v394
        %425 = vmatpush.msra.mxu0 %v392
        %426 = vmatpush.msra.mxu0 %v390
        %427 = vmatmul.f32.gmra.mxu0 %v406
        %v428 = vpop.f32.mrf.mxu0
        %v429 = vadd.f32 %v400, %v428
        %430 = vmatmul.f32.gmra.mxu0 %v409
        %v431 = vpop.f32.mrf.mxu0
        %v432 = vadd.f32 %v400, %v431
        %433 = vdwg.mxu0
        %434 = vmatpush.msra.mxu0 0.0
        %435 = vmatpush.msra.mxu0 0.0
        %436 = vmatpush.msra.mxu0 0.0
        %437 = vmatpush.msra.mxu0 0.0
        %438 = vmatpush.msra.mxu0 0.0
        %439 = vmatpush.msra.mxu0 0.0
        %440 = vmatpush.msra.mxu0 0.0
        %441 = vmatpush.msra.mxu0 0.0
        %442 = vmatpush.msra.mxu0 0.0
        %443 = vmatpush.msra.mxu0 0.0
        %444 = vmatpush.msra.mxu0 0.0
        %445 = vmatpush.msra.mxu0 0.0
        %446 = vmatpush.msra.mxu0 %v397
        %447 = vmatpush.msra.mxu0 %v395
        %448 = vmatpush.msra.mxu0 %v393
        %449 = vmatpush.msra.mxu0 %v391
        %450 = vmatmul.f32.gmra.mxu0 %v406
        %v451 = vpop.f32.mrf.mxu0
        %v452 = vadd.f32 %v401, %v451
        %453 = vmatmul.f32.gmra.mxu0 %v409
        %v454 = vpop.f32.mrf.mxu0
        %v455 = vadd.f32 %v401, %v454
        %456 = vdwg.mxu0
        %v457 = vmax.f32 %v429, 0.0
        %v458 = vmax.f32 %v452, 0.0
        %v459 = vmax.f32 %v432, 0.0
        %v460 = vmax.f32 %v455, 0.0
        %v461 = vld [vmem:[#allocation2] sm:$0xff]
        %v462 = vld [vmem:[#allocation2 + $0x8] sm:$0xff]
        %v463 = vld [vmem:[%s378] sm:$0xff]
        %v464 = vld [vmem:[%s378 + $0x8] sm:$0xff]
        %v465 = vld [vmem:[%s378 + $0x10] sm:$0xff]
        %v466 = vld [vmem:[%s378 + $0x18] sm:$0xff]
        %v467 = vld [vmem:[%s378 + $0x20] sm:$0xff]
        %v468 = vld [vmem:[%s378 + $0x28] sm:$0xff]
        %v469 = vld [vmem:[%s378 + $0x30] sm:$0xff]
        %v470 = vld [vmem:[%s378 + $0x38] sm:$0xff]
        %v471 = vld [vmem:[%s378 + $0x40] sm:$0xff]
        %v472 = vld [vmem:[%s378 + $0x48] sm:$0xff]
        %v473 = vld [vmem:[%s378 + $0x50] sm:$0xff]
        %v474 = vld [vmem:[%s378 + $0x58] sm:$0xff]
        %v475 = vld [vmem:[%s378 + $0x60] sm:$0xff]
        %v476 = vld [vmem:[%s378 + $0x68] sm:$0xff]
        %v477 = vld [vmem:[%s378 + $0x70] sm:$0xff]
        %v478 = vld [vmem:[%s378 + $0x78] sm:$0xff]
        %v479 = vld [vmem:[%s378 + $0x80] sm:$0xff]
        %v480 = vld [vmem:[%s378 + $0x88] sm:$0xff]
        %v481 = vld [vmem:[%s378 + $0x90] sm:$0xff]
        %v482 = vld [vmem:[%s378 + $0x98] sm:$0xff]
        %v483 = vld [vmem:[%s378 + $0xa0] sm:$0xff]
        %v484 = vld [vmem:[%s378 + $0xa8] sm:$0xff]
        %v485 = vld [vmem:[%s378 + $0xb0] sm:$0xff]
        %v486 = vld [vmem:[%s378 + $0xb8] sm:$0xff]
        %v487 = vld [vmem:[%s378 + $0xc0] sm:$0xff]
        %v488 = vld [vmem:[%s378 + $0xc8] sm:$0xff]
        %v489 = vld [vmem:[%s378 + $0xd0] sm:$0xff]
        %v490 = vld [vmem:[%s378 + $0xd8] sm:$0xff]
        %v491 = vld [vmem:[%s378 + $0xe0] sm:$0xff]
        %v492 = vld [vmem:[%s378 + $0xe8] sm:$0xff]
        %v493 = vld [vmem:[%s378 + $0xf0] sm:$0xff]
        %v494 = vld [vmem:[%s378 + $0xf8] sm:$0xff]
        %495 = vmatpush.msra.mxu0 %v478
        %496 = vmatpush.msra.mxu0 %v477
        %497 = vmatpush.msra.mxu0 %v476
        %498 = vmatpush.msra.mxu0 %v475
        %499 = vmatpush.msra.mxu0 %v474
        %500 = vmatpush.msra.mxu0 %v473
        %501 = vmatpush.msra.mxu0 %v472
        %502 = vmatpush.msra.mxu0 %v471
        %503 = vmatpush.msra.mxu0 %v470
        %504 = vmatpush.msra.mxu0 %v469
        %505 = vmatpush.msra.mxu0 %v468
        %506 = vmatpush.msra.mxu0 %v467
        %507 = vmatpush.msra.mxu0 %v466
        %508 = vmatpush.msra.mxu0 %v465
        %509 = vmatpush.msra.mxu0 %v464
        %510 = vmatpush.msra.mxu0 %v463
        %511 = vmatmul.f32.gmra.mxu0 %v457
        %v512 = vpop.f32.mrf.mxu0
        %v513 = vadd.f32 0.0, %v512
        %514 = vmatmul.f32.gmra.mxu0 %v459
        %v515 = vpop.f32.mrf.mxu0
        %v516 = vadd.f32 0.0, %v515
        %517 = vdwg.mxu0
        %518 = vmatpush.msra.mxu0 %v494
        %519 = vmatpush.msra.mxu0 %v493
        %520 = vmatpush.msra.mxu0 %v492
        %521 = vmatpush.msra.mxu0 %v491
        %522 = vmatpush.msra.mxu0 %v490
        %523 = vmatpush.msra.mxu0 %v489
        %524 = vmatpush.msra.mxu0 %v488
        %525 = vmatpush.msra.mxu0 %v487
        %526 = vmatpush.msra.mxu0 %v486
        %527 = vmatpush.msra.mxu0 %v485
        %528 = vmatpush.msra.mxu0 %v484
        %529 = vmatpush.msra.mxu0 %v483
        %530 = vmatpush.msra.mxu0 %v482
        %531 = vmatpush.msra.mxu0 %v481
        %532 = vmatpush.msra.mxu0 %v480
        %533 = vmatpush.msra.mxu0 %v479
        %534 = vmatmul.f32.gmra.mxu0 %v458
        %v535 = vpop.f32.mrf.mxu0
        %v536 = vadd.f32 %v513, %v535
        %537 = vmatmul.f32.gmra.mxu0 %v460
        %v538 = vpop.f32.mrf.mxu0
        %v539 = vadd.f32 %v516, %v538
        %540 = vdwg.mxu0
        %v541 = vadd.f32 %v461, %v536
        %v542 = vadd.f32 %v462, %v539
        %543 = vst.msk [vmem:[#allocation2] sm:$0xff] %vm404, %v541
        %544 = vst.msk [vmem:[#allocation2 + $0x8] sm:$0xff] %vm404, %v542
        %p545 = scmp.eq.s32.totalorder %s24, 7
        // Predicated region
        $region76: #{encoder_forward.3} parent=66 // pred_check
          %p546 = pneg %p545
        $region77: #{encoder_forward.3} parent=66 // pred_check_branch
          %548 = sbr.rel (%p546) target = $region79
        $region78: #{encoder_forward.3} parent=66 // pred_region
          %v549 = vld [vmem:[#allocation2] sm:$0xff]
          %v550 = vld [vmem:[#allocation2 + $0x8] sm:$0xff]
          %v551 = vadd.f32 %v388, %v549
          %v552 = vadd.f32 %v389, %v550
          %v553 = vld [vmem:[%s4] sm:$0x1]
          %v555 = vperm.slane %v553, 0
          %v557 = vadd.f32 %v551, %v555
          %v558 = vadd.f32 %v552, %v555
          %v559 = vsel %vm404, %v557, 0.0
          %560 = vadd.xlane.f32.xlu0 %v559
          %v561 = vpop.xlane.xlu0 %560
          %v562 = vsel %vm404, %v558, 0.0
          %563 = vadd.xlane.f32.xlu0 %v562
          %v564 = vpop.xlane.xlu0 %563
          %v565 = vrcp.pop 32.0
          %v566 = vmul.f32 32.0, %v565
          %v567 = vsub.f32 1.0, %v566
          %v568 = vmul.f32 %v565, %v567
          %v569 = vadd.f32 %v565, %v568
          %vm570 = vweird.f32 %v565
          %v571 = vsel %vm570, %v565, %v569
          %v572 = vmul.f32 %v561, %v571
          %v573 = vmul.f32 %v564, %v571
          %v574 = vsub.f32 %v557, %v572
          %v575 = vsub.f32 %v558, %v573
          %v576 = vmul.f32 %v574, %v574
          %v577 = vmul.f32 %v575, %v575
          %v578 = vsel %vm404, %v576, 0.0
          %579 = vadd.xlane.f32.xlu0 %v578
          %v580 = vpop.xlane.xlu0 %579
          %v581 = vsel %vm404, %v577, 0.0
          %582 = vadd.xlane.f32.xlu0 %v581
          %v583 = vpop.xlane.xlu0 %582
          %v584 = vmul.f32 %v580, %v571
          %v585 = vmul.f32 %v583, %v571
          %v586 = vadd.f32 %v584, 1e-05
          %v587 = vadd.f32 %v585, 1e-05
          %v588 = vrsqrt.pop %v586
          %v589 = vmul.f32 %v588, %v586
          %v590 = vmul.f32 %v589, %v588
          %v591 = vmul.f32 0.5, %v590
          %v592 = vsub.f32 1.5, %v591
          %v593 = vmul.f32 %v588, %v592
          %vm594 = vweird.f32 %v586
          %vm595 = vweird.f32 %v588
          %vm596 = vmor %vm594, %vm595
          %v597 = vsel %vm596, %v588, %v593
          %v598 = vrsqrt.pop %v587
          %v599 = vmul.f32 %v598, %v587
          %v600 = vmul.f32 %v599, %v598
          %v601 = vmul.f32 0.5, %v600
          %v602 = vsub.f32 1.5, %v601
          %v603 = vmul.f32 %v598, %v602
          %vm604 = vweird.f32 %v587
          %vm605 = vweird.f32 %v598
          %vm606 = vmor %vm604, %vm605
          %v607 = vsel %vm606, %v598, %v603
          %v608 = vmul.f32 %v574, %v597
          %v609 = vmul.f32 %v575, %v607
          %v610 = vld [vmem:[%s5] sm:$0x1]
          %v612 = vperm.slane %v610, 0
          %v614 = vmul.f32 %v608, %v612
          %v615 = vmul.f32 %v609, %v612
          %v616 = vld [vmem:[%s6] sm:$0x1]
          %v618 = vperm.slane %v616, 0
          %v620 = vadd.f32 %v614, %v618
          %v621 = vadd.f32 %v615, %v618
          %622 = vst.msk [vmem:[#allocation4] sm:$0xff] %vm404, %v620
          %623 = vst.msk [vmem:[#allocation4 + $0x8] sm:$0xff] %vm404, %v621
        $region79: #{encoder_forward.3} parent=66 // pred_fallthru
          _
        // Predicated region
        $region80: #{encoder_forward.3} parent=66 // pred_check
          %p624 = pneg %p216
        $region81: #{encoder_forward.3} parent=66 // pred_check_branch
          %626 = sbr.rel (%p624) target = $region83
        $region82: #{encoder_forward.3} parent=66 // pred_region
          %s627 = smul.u32 2, %s23
          %629 = vsyncadd [#allocation5], 0
          %s630 = smul.addr %s627, 8
          %s631 = scalar_lea.hbm %s7, %s630
          %s632 = sshll.u32 [#allocation4], 4
          %s633 = int_to_ptr.vmem [resolvable:$true] %s632
          %s634 = sshll.u32 %s631, 4
          %s635 = int_to_ptr.hbm [resolvable:$true] %s634
          %640 = dma.vmem_to_hbm [thread:$0]  %s633, 256, %s635, [#allocation5], 128, 128, 8
        $region83: #{encoder_forward.3} parent=66 // pred_fallthru
          _
        // Predicated region
        $region84: #{encoder_forward.3} parent=66 // pred_check
          %p641 = pneg %p216
        $region85: #{encoder_forward.3} parent=66 // pred_check_branch
          %643 = sbr.rel (%p641) target = $region87
        $region86: #{encoder_forward.3} parent=66 // pred_region
          %645 = dma.done [#allocation5], 256
        $region87: #{encoder_forward.3} parent=66 // pred_fallthru
          _
      $region67: #{encoder_forward.3} parent=5 // pred_fallthru
        _
      %p646 = scmp.le.s32.totalorder 2, %s14
      // Predicated region
      $region88: #{encoder_forward.3} parent=5 // pred_check
        %p647 = pneg %p646
      $region89: #{encoder_forward.3} parent=5 // pred_check_branch
        %649 = sbr.rel (%p647) target = $region91
      $region90: #{encoder_forward.3} parent=5 // pred_region
        %s650 = ssub.s32 %s14, 2
      $region91: #{encoder_forward.3} parent=5 // pred_fallthru
        _
    $region6: #{encoder_forward.3} parent=1 // loop_footer
      %s18 = sadd.s32 1, %s14
    $region7: #{encoder_forward.3} parent=1 // loop_footer_branch
      %13 = sbr.rel target = $region3
    $region8: #{encoder_forward.3} parent=1 // loop_exit
      _
    %651 = vsyncpa [#allocation5], 1
    %s652 = scalar_lea.sflag [#allocation5], 1
    %653 = vsyncpa %s652, 1

</llo_original>
